<compile_context>
chip_gen: v6e
topology: v6e:2x2x1
jax: 0.10.0
libtpu: 0.0.40
codegen_flags: <defaults>
</compile_context>

<pallas_src>
import jax
import jax.numpy as jnp
from jax.experimental import pallas as pl
from jax.experimental.pallas import tpu as pltpu


def _mean_conv1x1_kernel(x_ref, w_ref, b_ref, o_ref):
    # x_ref: (1, C, HW) f32   w_ref: (O, C) bf16   b_ref: (1, O) f32
    # o_ref: (1, 1, O)  f32
    x = x_ref[0]                                   # (C, HW) — native NCHW layout
    inv_hw = 1.0 / x.shape[-1]                     # static trace-time constant
    # 1x1 conv as a single MXU matmul on bf16 operands (f32 accumulate); the
    # global-average pool commutes with it and becomes a tiny lane-axis sum.
    s = jnp.dot(w_ref[...], x.astype(jnp.bfloat16),
                preferred_element_type=jnp.float32)            # (O, HW) f32
    y = jnp.sum(s, axis=-1) * inv_hw                           # (O,) f32
    # Lane-dense store: (1, O) row + bias, one unmasked 76-lane vst.
    o_ref[0] = (y[None, :] + b_ref[...]).astype(o_ref.dtype)


def mean_conv2d_1x1(x_nchw, weight, bias):
    """x_nchw: (N, C, H, W); weight: (O, C, 1, 1); bias: (O,) -> (N, O, 1, 1)."""
    N, C, H, W = x_nchw.shape
    O = weight.shape[0]
    HW = H * W

    # Reshape-only glue (no transposes, no extra HBM passes over x).
    x = x_nchw.reshape(N, C, HW)                  # (N, C, HW), contiguous
    # bf16 weight halves the dominant HBM read; f32 accumulate keeps precision.
    w = weight.reshape(O, C).astype(jnp.bfloat16)  # (O, C) bf16
    b = bias.reshape(1, O)                         # (1, O) lane-dense, f32

    x_spec_kwargs = {}
    if N > 1:
        # Deeper buffering hides x's strided short-row DMA behind the previous
        # image's compute (VMEM headroom is huge: ~1 MB extra vs >=16 MB scoped).
        x_spec_kwargs["pipeline_mode"] = pl.Buffered(3)
    x_spec = pl.BlockSpec((1, C, HW), lambda n: (n, 0, 0), **x_spec_kwargs)

    cost = pl.CostEstimate(
        flops=2 * N * O * C * HW,
        transcendentals=0,
        bytes_accessed=(O * C * 2                      # W (bf16)
                        + N * C * HW * x.dtype.itemsize  # x (f32)
                        + O * 4                          # bias
                        + N * O * x.dtype.itemsize),     # out
    )

    out = pl.pallas_call(
        _mean_conv1x1_kernel,
        out_shape=jax.ShapeDtypeStruct((N, 1, O), x_nchw.dtype),
        grid=(N,),
        in_specs=[
            x_spec,                                         # one image per step
            pl.BlockSpec((O, C), lambda n: (0, 0)),         # weight resident
            pl.BlockSpec((1, O), lambda n: (0, 0)),         # bias resident
        ],
        out_specs=pl.BlockSpec((1, 1, O), lambda n: (n, 0, 0)),
        compiler_params=pltpu.CompilerParams(
            dimension_semantics=("parallel",) if N > 1 else ("arbitrary",)),
        cost_estimate=cost,
    )(x, w, b)

    # (N, 1, O) -> (N, O, 1, 1): identical element order, reshape is free.
    return out.reshape(N, O, 1, 1)


if __name__ == "__main__":
    # Shapes implied by the module: x462 (1, 1824, 7, 7), Conv2d(1824, 76, 1).
    N, C, H, W, O = 1, 1824, 7, 7, 76

    key = jax.random.PRNGKey(0)
    kx, kw, kb = jax.random.split(key, 3)
    x = jax.random.normal(kx, (N, C, H, W), dtype=jnp.float32)
    weight = jax.random.normal(kw, (O, C, 1, 1), dtype=jnp.float32) * 0.02
    bias = jax.random.normal(kb, (O,), dtype=jnp.float32) * 0.02

    out = mean_conv2d_1x1(x, weight, bias)
    out = jax.block_until_ready(out)
    assert out.shape == (N, O, 1, 1), out.shape

    # Pure-JAX f32 reference (mean-first, matching the PyTorch module).
    pooled = jnp.mean(x, axis=(2, 3))                       # (N, C)
    ref = (pooled @ weight.reshape(O, C).T + bias).reshape(N, O, 1, 1)
    # Kernel uses bf16 matmul operands with f32 accumulation -> ~1e-3 abs
    # deviation from the f32 reference; tolerance loosened accordingly.
    assert jnp.allclose(out, ref, atol=2e-2, rtol=2e-2), (
        float(jnp.max(jnp.abs(out - ref))))

    print("KERNEL_OK")
</pallas_src>

<mosaic_0001>
module attributes {stable_mosaic.version = 11 : i64} {
  func.func @_mean_conv1x1_kernel(%arg0: i32, %arg1: memref<1x1824x49xf32, #tpu.memory_space<vmem>>, %arg2: memref<76x1824xbf16, #tpu.memory_space<vmem>>, %arg3: memref<1x76xf32, #tpu.memory_space<vmem>>, %arg4: memref<1x1x76xf32, #tpu.memory_space<vmem>>) attributes {dimension_semantics = [#tpu.dimension_semantics<arbitrary>], iteration_bounds = array<i64: 1>, scalar_prefetch = 0 : i64, scratch_operands = 0 : i64, tpu.core_type = #tpu.core_type<tc>, window_params = [{transform_indices = @transform_0, window_bounds = array<i64: 1, 1824, 49>}, {pipeline_mode = #tpu.pipeline_mode<synchronous>, transform_indices = @transform_1, window_bounds = array<i64: 76, 1824>}, {pipeline_mode = #tpu.pipeline_mode<synchronous>, transform_indices = @transform_2, window_bounds = array<i64: 1, 76>}, {transform_indices = @transform_3, window_bounds = array<i64: 1, 1, 76>}]} {
    %c0 = arith.constant 0 : index
    %c0_0 = arith.constant 0 : index
    %c0_1 = arith.constant 0 : index
    %0 = vector.load %arg1[%c0, %c0_0, %c0_1] : memref<1x1824x49xf32, #tpu.memory_space<vmem>>, vector<1x1824x49xf32>
    %1 = vector.shape_cast %0 : vector<1x1824x49xf32> to vector<1824x49xf32>
    %c0_2 = arith.constant 0 : index
    %c0_3 = arith.constant 0 : index
    %2 = vector.load %arg2[%c0_2, %c0_3] : memref<76x1824xbf16, #tpu.memory_space<vmem>>, vector<76x1824xbf16>
    %3 = arith.truncf %1 : vector<1824x49xf32> to vector<1824x49xbf16>
    %cst = arith.constant dense<0.000000e+00> : vector<76x49xf32>
    %4 = tpu.matmul %2, %3, %cst {dimension_numbers = #tpu.dot_dimension_numbers<[1], [0], [0], [1], [0, 0, 1, 1], [], []>} : vector<76x1824xbf16>, vector<1824x49xbf16>, vector<76x49xf32> -> vector<76x49xf32>
    %cst_4 = arith.constant dense<0.000000e+00> : vector<76xf32>
    %5 = vector.multi_reduction <add>, %4, %cst_4 [1] : vector<76x49xf32> to vector<76xf32>
    %cst_5 = arith.constant 0.0204081628 : f32
    %6 = vector.broadcast %cst_5 : f32 to vector<76xf32>
    %7 = arith.mulf %5, %6 : vector<76xf32>
    %8 = vector.shape_cast %7 : vector<76xf32> to vector<1x76xf32>
    %c0_6 = arith.constant 0 : index
    %c0_7 = arith.constant 0 : index
    %9 = vector.load %arg3[%c0_6, %c0_7] : memref<1x76xf32, #tpu.memory_space<vmem>>, vector<1x76xf32>
    %10 = arith.addf %8, %9 : vector<1x76xf32>
    %c0_8 = arith.constant 0 : index
    %c0_9 = arith.constant 0 : index
    %c0_10 = arith.constant 0 : index
    %11 = vector.load %arg4[%c0_8, %c0_9, %c0_10] : memref<1x1x76xf32, #tpu.memory_space<vmem>>, vector<1x1x76xf32>
    %12 = vector.shape_cast %11 : vector<1x1x76xf32> to vector<1x76xf32>
    %13 = vector.shape_cast %10 : vector<1x76xf32> to vector<1x1x76xf32>
    tpu.vector_store %arg4[%c0_8, %c0_9, %c0_10], %13 {strides = array<i32>} : memref<1x1x76xf32, #tpu.memory_space<vmem>>, vector<1x1x76xf32>,
    return
  }
  func.func @transform_0(%arg0: i32) -> (i32, i32, i32) {
    %c0_i32 = arith.constant 0 : i32
    %c0_i32_0 = arith.constant 0 : i32
    %c0_i32_1 = arith.constant 0 : i32
    return %arg0, %c0_i32, %c0_i32_0 : i32, i32, i32
  }
  func.func @transform_1(%arg0: i32) -> (i32, i32) {
    %c0_i32 = arith.constant 0 : i32
    %c0_i32_0 = arith.constant 0 : i32
    %c0_i32_1 = arith.constant 0 : i32
    return %c0_i32, %c0_i32_0 : i32, i32
  }
  func.func @transform_2(%arg0: i32) -> (i32, i32) {
    %c0_i32 = arith.constant 0 : i32
    %c0_i32_0 = arith.constant 0 : i32
    %c0_i32_1 = arith.constant 0 : i32
    return %c0_i32, %c0_i32_0 : i32, i32
  }
  func.func @transform_3(%arg0: i32) -> (i32, i32, i32) {
    %c0_i32 = arith.constant 0 : i32
    %c0_i32_0 = arith.constant 0 : i32
    %c0_i32_1 = arith.constant 0 : i32
    return %arg0, %c0_i32, %c0_i32_0 : i32, i32, i32
  }
}

</mosaic_0001>

<llo_original>
// kernel: tpu_custom_call.1
$region0: #{tpu_custom_call.1}
  #allocation0 [shape = 'u32[]', space=smem, size = 0x4, offset = 0x4, fixed_abs, tag = 'smem constant byte address 0x4 - core index']
  #allocation1 [shape = 'u32[144,128]{1,0:T(1,128)}', space=vmem, size = 0x12000, scoped, tag = 'internal scratch']
  %s0 = inlined_call_operand.vmem [shape: f32[1,1824,49], index: 0, kind: input, shape index: {}]
  %s1 = inlined_call_operand.vmem [shape: bf16[76,1824], index: 1, kind: input, shape index: {}]
  %s2 = inlined_call_operand.vmem [shape: f32[1,76], index: 2, kind: input, shape index: {}]
  %s3 = inlined_call_operand.hbm [shape: f32[1,1,76], index: 3, kind: output, shape index: {}]
  %s4 = sld [smem:[#allocation0]]
  $region22: #{tpu_custom_call.1} parent=0
    _
  %s6 = ssub.s32 1, %s4
  %s7 = scalar_select 0, %s6, %s4
  $region1: #{tpu_custom_call.1} parent=0
    #allocation2 [shape = 'u8[512]{0}', space=vmem, size = 0x400, scoped, tag = 'output window, operand 0, single buffered']
    #allocation3 [shape = 's32[1]{0}', space=sflag, size = 0x4, scoped, tag = 'scoped memory for tpu_custom_call.1']
    %8 = vsyncpa [#allocation3], 0
    // Predicated region
    $region2: #{tpu_custom_call.1} parent=1 // pred_check
      _
    $region3: #{tpu_custom_call.1} parent=1 // pred_check_branch
      %10 = sbr.rel (0) target = $region5
    $region4: #{tpu_custom_call.1} parent=1 // pred_region
      _
    $region5: #{tpu_custom_call.1} parent=1 // pred_fallthru
      _
    // Predicated region
    $region6: #{tpu_custom_call.1} parent=1 // pred_check
      _
    $region7: #{tpu_custom_call.1} parent=1 // pred_check_branch
      %12 = sbr.rel (0) target = $region9
    $region8: #{tpu_custom_call.1} parent=1 // pred_region
      _
    $region9: #{tpu_custom_call.1} parent=1 // pred_fallthru
      _
    // Predicated region
    $region10: #{tpu_custom_call.1} parent=1 // pred_check
      _
    $region11: #{tpu_custom_call.1} parent=1 // pred_check_branch
      %14 = sbr.rel (0) target = $region13
    $region12: #{tpu_custom_call.1} parent=1 // pred_region
      _
    $region13: #{tpu_custom_call.1} parent=1 // pred_fallthru
      _
    %v16 = vld [vmem:[%s0] sm:$0xff]
    %v17 = vld [vmem:[%s0 + $0x8] sm:$0xff]
    %v18 = vld [vmem:[%s0 + $0x10] sm:$0xff]
    %v19 = vld [vmem:[%s0 + $0x18] sm:$0xff]
    %v20 = vld [vmem:[%s0 + $0x20] sm:$0xff]
    %v21 = vld [vmem:[%s0 + $0x28] sm:$0xff]
    %v22 = vld [vmem:[%s0 + $0x30] sm:$0xff]
    %v23 = vld [vmem:[%s0 + $0x38] sm:$0xff]
    %v24 = vld [vmem:[%s0 + $0x40] sm:$0xff]
    %v25 = vld [vmem:[%s0 + $0x48] sm:$0xff]
    %v26 = vld [vmem:[%s0 + $0x50] sm:$0xff]
    %v27 = vld [vmem:[%s0 + $0x58] sm:$0xff]
    %v28 = vld [vmem:[%s0 + $0x60] sm:$0xff]
    %v29 = vld [vmem:[%s0 + $0x68] sm:$0xff]
    %v30 = vld [vmem:[%s0 + $0x70] sm:$0xff]
    %v31 = vld [vmem:[%s0 + $0x78] sm:$0xff]
    %v32 = vld [vmem:[%s0 + $0x80] sm:$0xff]
    %v33 = vld [vmem:[%s0 + $0x88] sm:$0xff]
    %v34 = vld [vmem:[%s0 + $0x90] sm:$0xff]
    %v35 = vld [vmem:[%s0 + $0x98] sm:$0xff]
    %v36 = vld [vmem:[%s0 + $0xa0] sm:$0xff]
    %v37 = vld [vmem:[%s0 + $0xa8] sm:$0xff]
    %v38 = vld [vmem:[%s0 + $0xb0] sm:$0xff]
    %v39 = vld [vmem:[%s0 + $0xb8] sm:$0xff]
    %v40 = vld [vmem:[%s0 + $0xc0] sm:$0xff]
    %v41 = vld [vmem:[%s0 + $0xc8] sm:$0xff]
    %v42 = vld [vmem:[%s0 + $0xd0] sm:$0xff]
    %v43 = vld [vmem:[%s0 + $0xd8] sm:$0xff]
    %v44 = vld [vmem:[%s0 + $0xe0] sm:$0xff]
    %v45 = vld [vmem:[%s0 + $0xe8] sm:$0xff]
    %v46 = vld [vmem:[%s0 + $0xf0] sm:$0xff]
    %v47 = vld [vmem:[%s0 + $0xf8] sm:$0xff]
    %v48 = vld [vmem:[%s0 + $0x100] sm:$0xff]
    %v49 = vld [vmem:[%s0 + $0x108] sm:$0xff]
    %v50 = vld [vmem:[%s0 + $0x110] sm:$0xff]
    %v51 = vld [vmem:[%s0 + $0x118] sm:$0xff]
    %v52 = vld [vmem:[%s0 + $0x120] sm:$0xff]
    %v53 = vld [vmem:[%s0 + $0x128] sm:$0xff]
    %v54 = vld [vmem:[%s0 + $0x130] sm:$0xff]
    %v55 = vld [vmem:[%s0 + $0x138] sm:$0xff]
    %v56 = vld [vmem:[%s0 + $0x140] sm:$0xff]
    %v57 = vld [vmem:[%s0 + $0x148] sm:$0xff]
    %v58 = vld [vmem:[%s0 + $0x150] sm:$0xff]
    %v59 = vld [vmem:[%s0 + $0x158] sm:$0xff]
    %v60 = vld [vmem:[%s0 + $0x160] sm:$0xff]
    %v61 = vld [vmem:[%s0 + $0x168] sm:$0xff]
    %v62 = vld [vmem:[%s0 + $0x170] sm:$0xff]
    %v63 = vld [vmem:[%s0 + $0x178] sm:$0xff]
    %v64 = vld [vmem:[%s0 + $0x180] sm:$0xff]
    %v65 = vld [vmem:[%s0 + $0x188] sm:$0xff]
    %v66 = vld [vmem:[%s0 + $0x190] sm:$0xff]
    %v67 = vld [vmem:[%s0 + $0x198] sm:$0xff]
    %v68 = vld [vmem:[%s0 + $0x1a0] sm:$0xff]
    %v69 = vld [vmem:[%s0 + $0x1a8] sm:$0xff]
    %v70 = vld [vmem:[%s0 + $0x1b0] sm:$0xff]
    %v71 = vld [vmem:[%s0 + $0x1b8] sm:$0xff]
    %v72 = vld [vmem:[%s0 + $0x1c0] sm:$0xff]
    %v73 = vld [vmem:[%s0 + $0x1c8] sm:$0xff]
    %v74 = vld [vmem:[%s0 + $0x1d0] sm:$0xff]
    %v75 = vld [vmem:[%s0 + $0x1d8] sm:$0xff]
    %v76 = vld [vmem:[%s0 + $0x1e0] sm:$0xff]
    %v77 = vld [vmem:[%s0 + $0x1e8] sm:$0xff]
    %v78 = vld [vmem:[%s0 + $0x1f0] sm:$0xff]
    %v79 = vld [vmem:[%s0 + $0x1f8] sm:$0xff]
    %v80 = vld [vmem:[%s0 + $0x200] sm:$0xff]
    %v81 = vld [vmem:[%s0 + $0x208] sm:$0xff]
    %v82 = vld [vmem:[%s0 + $0x210] sm:$0xff]
    %v83 = vld [vmem:[%s0 + $0x218] sm:$0xff]
    %v84 = vld [vmem:[%s0 + $0x220] sm:$0xff]
    %v85 = vld [vmem:[%s0 + $0x228] sm:$0xff]
    %v86 = vld [vmem:[%s0 + $0x230] sm:$0xff]
    %v87 = vld [vmem:[%s0 + $0x238] sm:$0xff]
    %v88 = vld [vmem:[%s0 + $0x240] sm:$0xff]
    %v89 = vld [vmem:[%s0 + $0x248] sm:$0xff]
    %v90 = vld [vmem:[%s0 + $0x250] sm:$0xff]
    %v91 = vld [vmem:[%s0 + $0x258] sm:$0xff]
    %v92 = vld [vmem:[%s0 + $0x260] sm:$0xff]
    %v93 = vld [vmem:[%s0 + $0x268] sm:$0xff]
    %v94 = vld [vmem:[%s0 + $0x270] sm:$0xff]
    %v95 = vld [vmem:[%s0 + $0x278] sm:$0xff]
    %v96 = vld [vmem:[%s0 + $0x280] sm:$0xff]
    %v97 = vld [vmem:[%s0 + $0x288] sm:$0xff]
    %v98 = vld [vmem:[%s0 + $0x290] sm:$0xff]
    %v99 = vld [vmem:[%s0 + $0x298] sm:$0xff]
    %v100 = vld [vmem:[%s0 + $0x2a0] sm:$0xff]
    %v101 = vld [vmem:[%s0 + $0x2a8] sm:$0xff]
    %v102 = vld [vmem:[%s0 + $0x2b0] sm:$0xff]
    %v103 = vld [vmem:[%s0 + $0x2b8] sm:$0xff]
    %v104 = vld [vmem:[%s0 + $0x2c0] sm:$0xff]
    %v105 = vld [vmem:[%s0 + $0x2c8] sm:$0xff]
    %v106 = vld [vmem:[%s0 + $0x2d0] sm:$0xff]
    %v107 = vld [vmem:[%s0 + $0x2d8] sm:$0xff]
    %v108 = vld [vmem:[%s0 + $0x2e0] sm:$0xff]
    %v109 = vld [vmem:[%s0 + $0x2e8] sm:$0xff]
    %v110 = vld [vmem:[%s0 + $0x2f0] sm:$0xff]
    %v111 = vld [vmem:[%s0 + $0x2f8] sm:$0xff]
    %v112 = vld [vmem:[%s0 + $0x300] sm:$0xff]
    %v113 = vld [vmem:[%s0 + $0x308] sm:$0xff]
    %v114 = vld [vmem:[%s0 + $0x310] sm:$0xff]
    %v115 = vld [vmem:[%s0 + $0x318] sm:$0xff]
    %v116 = vld [vmem:[%s0 + $0x320] sm:$0xff]
    %v117 = vld [vmem:[%s0 + $0x328] sm:$0xff]
    %v118 = vld [vmem:[%s0 + $0x330] sm:$0xff]
    %v119 = vld [vmem:[%s0 + $0x338] sm:$0xff]
    %v120 = vld [vmem:[%s0 + $0x340] sm:$0xff]
    %v121 = vld [vmem:[%s0 + $0x348] sm:$0xff]
    %v122 = vld [vmem:[%s0 + $0x350] sm:$0xff]
    %v123 = vld [vmem:[%s0 + $0x358] sm:$0xff]
    %v124 = vld [vmem:[%s0 + $0x360] sm:$0xff]
    %v125 = vld [vmem:[%s0 + $0x368] sm:$0xff]
    %v126 = vld [vmem:[%s0 + $0x370] sm:$0xff]
    %v127 = vld [vmem:[%s0 + $0x378] sm:$0xff]
    %v128 = vld [vmem:[%s0 + $0x380] sm:$0xff]
    %v129 = vld [vmem:[%s0 + $0x388] sm:$0xff]
    %v130 = vld [vmem:[%s0 + $0x390] sm:$0xff]
    %v131 = vld [vmem:[%s0 + $0x398] sm:$0xff]
    %v132 = vld [vmem:[%s0 + $0x3a0] sm:$0xff]
    %v133 = vld [vmem:[%s0 + $0x3a8] sm:$0xff]
    %v134 = vld [vmem:[%s0 + $0x3b0] sm:$0xff]
    %v135 = vld [vmem:[%s0 + $0x3b8] sm:$0xff]
    %v136 = vld [vmem:[%s0 + $0x3c0] sm:$0xff]
    %v137 = vld [vmem:[%s0 + $0x3c8] sm:$0xff]
    %v138 = vld [vmem:[%s0 + $0x3d0] sm:$0xff]
    %v139 = vld [vmem:[%s0 + $0x3d8] sm:$0xff]
    %v140 = vld [vmem:[%s0 + $0x3e0] sm:$0xff]
    %v141 = vld [vmem:[%s0 + $0x3e8] sm:$0xff]
    %v142 = vld [vmem:[%s0 + $0x3f0] sm:$0xff]
    %v143 = vld [vmem:[%s0 + $0x3f8] sm:$0xff]
    %v144 = vld [vmem:[%s0 + $0x400] sm:$0xff]
    %v145 = vld [vmem:[%s0 + $0x408] sm:$0xff]
    %v146 = vld [vmem:[%s0 + $0x410] sm:$0xff]
    %v147 = vld [vmem:[%s0 + $0x418] sm:$0xff]
    %v148 = vld [vmem:[%s0 + $0x420] sm:$0xff]
    %v149 = vld [vmem:[%s0 + $0x428] sm:$0xff]
    %v150 = vld [vmem:[%s0 + $0x430] sm:$0xff]
    %v151 = vld [vmem:[%s0 + $0x438] sm:$0xff]
    %v152 = vld [vmem:[%s0 + $0x440] sm:$0xff]
    %v153 = vld [vmem:[%s0 + $0x448] sm:$0xff]
    %v154 = vld [vmem:[%s0 + $0x450] sm:$0xff]
    %v155 = vld [vmem:[%s0 + $0x458] sm:$0xff]
    %v156 = vld [vmem:[%s0 + $0x460] sm:$0xff]
    %v157 = vld [vmem:[%s0 + $0x468] sm:$0xff]
    %v158 = vld [vmem:[%s0 + $0x470] sm:$0xff]
    %v159 = vld [vmem:[%s0 + $0x478] sm:$0xff]
    %v160 = vld [vmem:[%s0 + $0x480] sm:$0xff]
    %v161 = vld [vmem:[%s0 + $0x488] sm:$0xff]
    %v162 = vld [vmem:[%s0 + $0x490] sm:$0xff]
    %v163 = vld [vmem:[%s0 + $0x498] sm:$0xff]
    %v164 = vld [vmem:[%s0 + $0x4a0] sm:$0xff]
    %v165 = vld [vmem:[%s0 + $0x4a8] sm:$0xff]
    %v166 = vld [vmem:[%s0 + $0x4b0] sm:$0xff]
    %v167 = vld [vmem:[%s0 + $0x4b8] sm:$0xff]
    %v168 = vld [vmem:[%s0 + $0x4c0] sm:$0xff]
    %v169 = vld [vmem:[%s0 + $0x4c8] sm:$0xff]
    %v170 = vld [vmem:[%s0 + $0x4d0] sm:$0xff]
    %v171 = vld [vmem:[%s0 + $0x4d8] sm:$0xff]
    %v172 = vld [vmem:[%s0 + $0x4e0] sm:$0xff]
    %v173 = vld [vmem:[%s0 + $0x4e8] sm:$0xff]
    %v174 = vld [vmem:[%s0 + $0x4f0] sm:$0xff]
    %v175 = vld [vmem:[%s0 + $0x4f8] sm:$0xff]
    %v176 = vld [vmem:[%s0 + $0x500] sm:$0xff]
    %v177 = vld [vmem:[%s0 + $0x508] sm:$0xff]
    %v178 = vld [vmem:[%s0 + $0x510] sm:$0xff]
    %v179 = vld [vmem:[%s0 + $0x518] sm:$0xff]
    %v180 = vld [vmem:[%s0 + $0x520] sm:$0xff]
    %v181 = vld [vmem:[%s0 + $0x528] sm:$0xff]
    %v182 = vld [vmem:[%s0 + $0x530] sm:$0xff]
    %v183 = vld [vmem:[%s0 + $0x538] sm:$0xff]
    %v184 = vld [vmem:[%s0 + $0x540] sm:$0xff]
    %v185 = vld [vmem:[%s0 + $0x548] sm:$0xff]
    %v186 = vld [vmem:[%s0 + $0x550] sm:$0xff]
    %v187 = vld [vmem:[%s0 + $0x558] sm:$0xff]
    %v188 = vld [vmem:[%s0 + $0x560] sm:$0xff]
    %v189 = vld [vmem:[%s0 + $0x568] sm:$0xff]
    %v190 = vld [vmem:[%s0 + $0x570] sm:$0xff]
    %v191 = vld [vmem:[%s0 + $0x578] sm:$0xff]
    %v192 = vld [vmem:[%s0 + $0x580] sm:$0xff]
    %v193 = vld [vmem:[%s0 + $0x588] sm:$0xff]
    %v194 = vld [vmem:[%s0 + $0x590] sm:$0xff]
    %v195 = vld [vmem:[%s0 + $0x598] sm:$0xff]
    %v196 = vld [vmem:[%s0 + $0x5a0] sm:$0xff]
    %v197 = vld [vmem:[%s0 + $0x5a8] sm:$0xff]
    %v198 = vld [vmem:[%s0 + $0x5b0] sm:$0xff]
    %v199 = vld [vmem:[%s0 + $0x5b8] sm:$0xff]
    %v200 = vld [vmem:[%s0 + $0x5c0] sm:$0xff]
    %v201 = vld [vmem:[%s0 + $0x5c8] sm:$0xff]
    %v202 = vld [vmem:[%s0 + $0x5d0] sm:$0xff]
    %v203 = vld [vmem:[%s0 + $0x5d8] sm:$0xff]
    %v204 = vld [vmem:[%s0 + $0x5e0] sm:$0xff]
    %v205 = vld [vmem:[%s0 + $0x5e8] sm:$0xff]
    %v206 = vld [vmem:[%s0 + $0x5f0] sm:$0xff]
    %v207 = vld [vmem:[%s0 + $0x5f8] sm:$0xff]
    %v208 = vld [vmem:[%s0 + $0x600] sm:$0xff]
    %v209 = vld [vmem:[%s0 + $0x608] sm:$0xff]
    %v210 = vld [vmem:[%s0 + $0x610] sm:$0xff]
    %v211 = vld [vmem:[%s0 + $0x618] sm:$0xff]
    %v212 = vld [vmem:[%s0 + $0x620] sm:$0xff]
    %v213 = vld [vmem:[%s0 + $0x628] sm:$0xff]
    %v214 = vld [vmem:[%s0 + $0x630] sm:$0xff]
    %v215 = vld [vmem:[%s0 + $0x638] sm:$0xff]
    %v216 = vld [vmem:[%s0 + $0x640] sm:$0xff]
    %v217 = vld [vmem:[%s0 + $0x648] sm:$0xff]
    %v218 = vld [vmem:[%s0 + $0x650] sm:$0xff]
    %v219 = vld [vmem:[%s0 + $0x658] sm:$0xff]
    %v220 = vld [vmem:[%s0 + $0x660] sm:$0xff]
    %v221 = vld [vmem:[%s0 + $0x668] sm:$0xff]
    %v222 = vld [vmem:[%s0 + $0x670] sm:$0xff]
    %v223 = vld [vmem:[%s0 + $0x678] sm:$0xff]
    %v224 = vld [vmem:[%s0 + $0x680] sm:$0xff]
    %v225 = vld [vmem:[%s0 + $0x688] sm:$0xff]
    %v226 = vld [vmem:[%s0 + $0x690] sm:$0xff]
    %v227 = vld [vmem:[%s0 + $0x698] sm:$0xff]
    %v228 = vld [vmem:[%s0 + $0x6a0] sm:$0xff]
    %v229 = vld [vmem:[%s0 + $0x6a8] sm:$0xff]
    %v230 = vld [vmem:[%s0 + $0x6b0] sm:$0xff]
    %v231 = vld [vmem:[%s0 + $0x6b8] sm:$0xff]
    %v232 = vld [vmem:[%s0 + $0x6c0] sm:$0xff]
    %v233 = vld [vmem:[%s0 + $0x6c8] sm:$0xff]
    %v234 = vld [vmem:[%s0 + $0x6d0] sm:$0xff]
    %v235 = vld [vmem:[%s0 + $0x6d8] sm:$0xff]
    %v236 = vld [vmem:[%s0 + $0x6e0] sm:$0xff]
    %v237 = vld [vmem:[%s0 + $0x6e8] sm:$0xff]
    %v238 = vld [vmem:[%s0 + $0x6f0] sm:$0xff]
    %v239 = vld [vmem:[%s0 + $0x6f8] sm:$0xff]
    %v240 = vld [vmem:[%s0 + $0x700] sm:$0xff]
    %v241 = vld [vmem:[%s0 + $0x708] sm:$0xff]
    %v242 = vld [vmem:[%s0 + $0x710] sm:$0xff]
    %v243 = vld [vmem:[%s0 + $0x718] sm:$0xff]
    %v244 = vld [vmem:[%s1] sm:$0xff]
    %v245 = vld [vmem:[%s1 + $0x8] sm:$0xff]
    %v246 = vld [vmem:[%s1 + $0x10] sm:$0xff]
    %v247 = vld [vmem:[%s1 + $0x18] sm:$0xff]
    %v248 = vld [vmem:[%s1 + $0x20] sm:$0xff]
    %v249 = vld [vmem:[%s1 + $0x28] sm:$0xff]
    %v250 = vld [vmem:[%s1 + $0x30] sm:$0xff]
    %v251 = vld [vmem:[%s1 + $0x38] sm:$0xf]
    %v252 = vld [vmem:[%s1 + $0x3c] sm:$0xff]
    %v253 = vld [vmem:[%s1 + $0x44] sm:$0xff]
    %v254 = vld [vmem:[%s1 + $0x4c] sm:$0xff]
    %v255 = vld [vmem:[%s1 + $0x54] sm:$0xff]
    %v256 = vld [vmem:[%s1 + $0x5c] sm:$0xff]
    %v257 = vld [vmem:[%s1 + $0x64] sm:$0xff]
    %v258 = vld [vmem:[%s1 + $0x6c] sm:$0xff]
    %v259 = vld [vmem:[%s1 + $0x74] sm:$0xf]
    %v260 = vld [vmem:[%s1 + $0x78] sm:$0xff]
    %v261 = vld [vmem:[%s1 + $0x80] sm:$0xff]
    %v262 = vld [vmem:[%s1 + $0x88] sm:$0xff]
    %v263 = vld [vmem:[%s1 + $0x90] sm:$0xff]
    %v264 = vld [vmem:[%s1 + $0x98] sm:$0xff]
    %v265 = vld [vmem:[%s1 + $0xa0] sm:$0xff]
    %v266 = vld [vmem:[%s1 + $0xa8] sm:$0xff]
    %v267 = vld [vmem:[%s1 + $0xb0] sm:$0xf]
    %v268 = vld [vmem:[%s1 + $0xb4] sm:$0xff]
    %v269 = vld [vmem:[%s1 + $0xbc] sm:$0xff]
    %v270 = vld [vmem:[%s1 + $0xc4] sm:$0xff]
    %v271 = vld [vmem:[%s1 + $0xcc] sm:$0xff]
    %v272 = vld [vmem:[%s1 + $0xd4] sm:$0xff]
    %v273 = vld [vmem:[%s1 + $0xdc] sm:$0xff]
    %v274 = vld [vmem:[%s1 + $0xe4] sm:$0xff]
    %v275 = vld [vmem:[%s1 + $0xec] sm:$0xf]
    %v276 = vld [vmem:[%s1 + $0xf0] sm:$0xff]
    %v277 = vld [vmem:[%s1 + $0xf8] sm:$0xff]
    %v278 = vld [vmem:[%s1 + $0x100] sm:$0xff]
    %v279 = vld [vmem:[%s1 + $0x108] sm:$0xff]
    %v280 = vld [vmem:[%s1 + $0x110] sm:$0xff]
    %v281 = vld [vmem:[%s1 + $0x118] sm:$0xff]
    %v282 = vld [vmem:[%s1 + $0x120] sm:$0xff]
    %v283 = vld [vmem:[%s1 + $0x128] sm:$0xf]
    %v284 = vld [vmem:[%s1 + $0x12c] sm:$0xff]
    %v285 = vld [vmem:[%s1 + $0x134] sm:$0xff]
    %v286 = vld [vmem:[%s1 + $0x13c] sm:$0xff]
    %v287 = vld [vmem:[%s1 + $0x144] sm:$0xff]
    %v288 = vld [vmem:[%s1 + $0x14c] sm:$0xff]
    %v289 = vld [vmem:[%s1 + $0x154] sm:$0xff]
    %v290 = vld [vmem:[%s1 + $0x15c] sm:$0xff]
    %v291 = vld [vmem:[%s1 + $0x164] sm:$0xf]
    %v292 = vld [vmem:[%s1 + $0x168] sm:$0xff]
    %v293 = vld [vmem:[%s1 + $0x170] sm:$0xff]
    %v294 = vld [vmem:[%s1 + $0x178] sm:$0xff]
    %v295 = vld [vmem:[%s1 + $0x180] sm:$0xff]
    %v296 = vld [vmem:[%s1 + $0x188] sm:$0xff]
    %v297 = vld [vmem:[%s1 + $0x190] sm:$0xff]
    %v298 = vld [vmem:[%s1 + $0x198] sm:$0xff]
    %v299 = vld [vmem:[%s1 + $0x1a0] sm:$0xf]
    %v300 = vld [vmem:[%s1 + $0x1a4] sm:$0xff]
    %v301 = vld [vmem:[%s1 + $0x1ac] sm:$0xff]
    %v302 = vld [vmem:[%s1 + $0x1b4] sm:$0xff]
    %v303 = vld [vmem:[%s1 + $0x1bc] sm:$0xff]
    %v304 = vld [vmem:[%s1 + $0x1c4] sm:$0xff]
    %v305 = vld [vmem:[%s1 + $0x1cc] sm:$0xff]
    %v306 = vld [vmem:[%s1 + $0x1d4] sm:$0xff]
    %v307 = vld [vmem:[%s1 + $0x1dc] sm:$0xf]
    %v308 = vld [vmem:[%s1 + $0x1e0] sm:$0xff]
    %v309 = vld [vmem:[%s1 + $0x1e8] sm:$0xff]
    %v310 = vld [vmem:[%s1 + $0x1f0] sm:$0xff]
    %v311 = vld [vmem:[%s1 + $0x1f8] sm:$0xff]
    %v312 = vld [vmem:[%s1 + $0x200] sm:$0xff]
    %v313 = vld [vmem:[%s1 + $0x208] sm:$0xff]
    %v314 = vld [vmem:[%s1 + $0x210] sm:$0xff]
    %v315 = vld [vmem:[%s1 + $0x218] sm:$0xf]
    %v316 = vld [vmem:[%s1 + $0x21c] sm:$0x33]
    %v317 = vld [vmem:[%s1 + $0x224] sm:$0x33]
    %v318 = vld [vmem:[%s1 + $0x22c] sm:$0x33]
    %v319 = vld [vmem:[%s1 + $0x234] sm:$0x33]
    %v320 = vld [vmem:[%s1 + $0x23c] sm:$0x33]
    %v321 = vld [vmem:[%s1 + $0x244] sm:$0x33]
    %v322 = vld [vmem:[%s1 + $0x24c] sm:$0x33]
    %v323 = vld [vmem:[%s1 + $0x254] sm:$0x3]
    %v324 = vpack.c.bf16 %v17, %v16
    %v325 = vpack.c.bf16 %v19, %v18
    %v326 = vpack.c.bf16 %v21, %v20
    %v327 = vpack.c.bf16 %v23, %v22
    %v328 = vpack.c.bf16 %v25, %v24
    %v329 = vpack.c.bf16 %v27, %v26
    %v330 = vpack.c.bf16 %v29, %v28
    %v331 = vpack.c.bf16 %v31, %v30
    %v332 = vpack.c.bf16 %v33, %v32
    %v333 = vpack.c.bf16 %v35, %v34
    %v334 = vpack.c.bf16 %v37, %v36
    %v335 = vpack.c.bf16 %v39, %v38
    %v336 = vpack.c.bf16 %v41, %v40
    %v337 = vpack.c.bf16 %v43, %v42
    %v338 = vpack.c.bf16 %v45, %v44
    %v339 = vpack.c.bf16 %v47, %v46
    %v340 = vpack.c.bf16 %v49, %v48
    %v341 = vpack.c.bf16 %v51, %v50
    %v342 = vpack.c.bf16 %v53, %v52
    %v343 = vpack.c.bf16 %v55, %v54
    %v344 = vpack.c.bf16 %v57, %v56
    %v345 = vpack.c.bf16 %v59, %v58
    %v346 = vpack.c.bf16 %v61, %v60
    %v347 = vpack.c.bf16 %v63, %v62
    %v348 = vpack.c.bf16 %v65, %v64
    %v349 = vpack.c.bf16 %v67, %v66
    %v350 = vpack.c.bf16 %v69, %v68
    %v351 = vpack.c.bf16 %v71, %v70
    %v352 = vpack.c.bf16 %v73, %v72
    %v353 = vpack.c.bf16 %v75, %v74
    %v354 = vpack.c.bf16 %v77, %v76
    %v355 = vpack.c.bf16 %v79, %v78
    %v356 = vpack.c.bf16 %v81, %v80
    %v357 = vpack.c.bf16 %v83, %v82
    %v358 = vpack.c.bf16 %v85, %v84
    %v359 = vpack.c.bf16 %v87, %v86
    %v360 = vpack.c.bf16 %v89, %v88
    %v361 = vpack.c.bf16 %v91, %v90
    %v362 = vpack.c.bf16 %v93, %v92
    %v363 = vpack.c.bf16 %v95, %v94
    %v364 = vpack.c.bf16 %v97, %v96
    %v365 = vpack.c.bf16 %v99, %v98
    %v366 = vpack.c.bf16 %v101, %v100
    %v367 = vpack.c.bf16 %v103, %v102
    %v368 = vpack.c.bf16 %v105, %v104
    %v369 = vpack.c.bf16 %v107, %v106
    %v370 = vpack.c.bf16 %v109, %v108
    %v371 = vpack.c.bf16 %v111, %v110
    %v372 = vpack.c.bf16 %v113, %v112
    %v373 = vpack.c.bf16 %v115, %v114
    %v374 = vpack.c.bf16 %v117, %v116
    %v375 = vpack.c.bf16 %v119, %v118
    %v376 = vpack.c.bf16 %v121, %v120
    %v377 = vpack.c.bf16 %v123, %v122
    %v378 = vpack.c.bf16 %v125, %v124
    %v379 = vpack.c.bf16 %v127, %v126
    %v380 = vpack.c.bf16 %v129, %v128
    %v381 = vpack.c.bf16 %v131, %v130
    %v382 = vpack.c.bf16 %v133, %v132
    %v383 = vpack.c.bf16 %v135, %v134
    %v384 = vpack.c.bf16 %v137, %v136
    %v385 = vpack.c.bf16 %v139, %v138
    %v386 = vpack.c.bf16 %v141, %v140
    %v387 = vpack.c.bf16 %v143, %v142
    %v388 = vpack.c.bf16 %v145, %v144
    %v389 = vpack.c.bf16 %v147, %v146
    %v390 = vpack.c.bf16 %v149, %v148
    %v391 = vpack.c.bf16 %v151, %v150
    %v392 = vpack.c.bf16 %v153, %v152
    %v393 = vpack.c.bf16 %v155, %v154
    %v394 = vpack.c.bf16 %v157, %v156
    %v395 = vpack.c.bf16 %v159, %v158
    %v396 = vpack.c.bf16 %v161, %v160
    %v397 = vpack.c.bf16 %v163, %v162
    %v398 = vpack.c.bf16 %v165, %v164
    %v399 = vpack.c.bf16 %v167, %v166
    %v400 = vpack.c.bf16 %v169, %v168
    %v401 = vpack.c.bf16 %v171, %v170
    %v402 = vpack.c.bf16 %v173, %v172
    %v403 = vpack.c.bf16 %v175, %v174
    %v404 = vpack.c.bf16 %v177, %v176
    %v405 = vpack.c.bf16 %v179, %v178
    %v406 = vpack.c.bf16 %v181, %v180
    %v407 = vpack.c.bf16 %v183, %v182
    %v408 = vpack.c.bf16 %v185, %v184
    %v409 = vpack.c.bf16 %v187, %v186
    %v410 = vpack.c.bf16 %v189, %v188
    %v411 = vpack.c.bf16 %v191, %v190
    %v412 = vpack.c.bf16 %v193, %v192
    %v413 = vpack.c.bf16 %v195, %v194
    %v414 = vpack.c.bf16 %v197, %v196
    %v415 = vpack.c.bf16 %v199, %v198
    %v416 = vpack.c.bf16 %v201, %v200
    %v417 = vpack.c.bf16 %v203, %v202
    %v418 = vpack.c.bf16 %v205, %v204
    %v419 = vpack.c.bf16 %v207, %v206
    %v420 = vpack.c.bf16 %v209, %v208
    %v421 = vpack.c.bf16 %v211, %v210
    %v422 = vpack.c.bf16 %v213, %v212
    %v423 = vpack.c.bf16 %v215, %v214
    %v424 = vpack.c.bf16 %v217, %v216
    %v425 = vpack.c.bf16 %v219, %v218
    %v426 = vpack.c.bf16 %v221, %v220
    %v427 = vpack.c.bf16 %v223, %v222
    %v428 = vpack.c.bf16 %v225, %v224
    %v429 = vpack.c.bf16 %v227, %v226
    %v430 = vpack.c.bf16 %v229, %v228
    %v431 = vpack.c.bf16 %v231, %v230
    %v432 = vpack.c.bf16 %v233, %v232
    %v433 = vpack.c.bf16 %v235, %v234
    %v434 = vpack.c.bf16 %v237, %v236
    %v435 = vpack.c.bf16 %v239, %v238
    %v436 = vpack.c.bf16 %v241, %v240
    %v437 = vpack.c.bf16 %v243, %v242
    %v518 = vunpack.c.l.b16 %v244
    %v519 = vunpack.c.h.b16 %v244
    %v520 = vunpack.c.l.b16 %v245
    %v521 = vunpack.c.h.b16 %v245
    %v522 = vunpack.c.l.b16 %v246
    %v523 = vunpack.c.h.b16 %v246
    %v524 = vunpack.c.l.b16 %v247
    %v525 = vunpack.c.h.b16 %v247
    %v526 = vunpack.c.l.b16 %v248
    %v527 = vunpack.c.h.b16 %v248
    %v528 = vunpack.c.l.b16 %v249
    %v529 = vunpack.c.h.b16 %v249
    %v530 = vunpack.c.l.b16 %v250
    %v531 = vunpack.c.h.b16 %v250
    %v532 = vunpack.c.l.b16 %v251
    %v533 = vunpack.c.l.b16 %v252
    %v534 = vunpack.c.h.b16 %v252
    %v535 = vunpack.c.l.b16 %v253
    %v536 = vunpack.c.h.b16 %v253
    %v537 = vunpack.c.l.b16 %v254
    %v538 = vunpack.c.h.b16 %v254
    %v539 = vunpack.c.l.b16 %v255
    %v540 = vunpack.c.h.b16 %v255
    %v541 = vunpack.c.l.b16 %v256
    %v542 = vunpack.c.h.b16 %v256
    %v543 = vunpack.c.l.b16 %v257
    %v544 = vunpack.c.h.b16 %v257
    %v545 = vunpack.c.l.b16 %v258
    %v546 = vunpack.c.h.b16 %v258
    %v547 = vunpack.c.l.b16 %v259
    %v548 = vunpack.c.l.b16 %v260
    %v549 = vunpack.c.h.b16 %v260
    %v550 = vunpack.c.l.b16 %v261
    %v551 = vunpack.c.h.b16 %v261
    %v552 = vunpack.c.l.b16 %v262
    %v553 = vunpack.c.h.b16 %v262
    %v554 = vunpack.c.l.b16 %v263
    %v555 = vunpack.c.h.b16 %v263
    %v556 = vunpack.c.l.b16 %v264
    %v557 = vunpack.c.h.b16 %v264
    %v558 = vunpack.c.l.b16 %v265
    %v559 = vunpack.c.h.b16 %v265
    %v560 = vunpack.c.l.b16 %v266
    %v561 = vunpack.c.h.b16 %v266
    %v562 = vunpack.c.l.b16 %v267
    %v563 = vunpack.c.l.b16 %v268
    %v564 = vunpack.c.h.b16 %v268
    %v565 = vunpack.c.l.b16 %v269
    %v566 = vunpack.c.h.b16 %v269
    %v567 = vunpack.c.l.b16 %v270
    %v568 = vunpack.c.h.b16 %v270
    %v569 = vunpack.c.l.b16 %v271
    %v570 = vunpack.c.h.b16 %v271
    %v571 = vunpack.c.l.b16 %v272
    %v572 = vunpack.c.h.b16 %v272
    %v573 = vunpack.c.l.b16 %v273
    %v574 = vunpack.c.h.b16 %v273
    %v575 = vunpack.c.l.b16 %v274
    %v576 = vunpack.c.h.b16 %v274
    %v577 = vunpack.c.l.b16 %v275
    %v578 = vunpack.c.l.b16 %v276
    %v579 = vunpack.c.h.b16 %v276
    %v580 = vunpack.c.l.b16 %v277
    %v581 = vunpack.c.h.b16 %v277
    %v582 = vunpack.c.l.b16 %v278
    %v583 = vunpack.c.h.b16 %v278
    %v584 = vunpack.c.l.b16 %v279
    %v585 = vunpack.c.h.b16 %v279
    %v586 = vunpack.c.l.b16 %v280
    %v587 = vunpack.c.h.b16 %v280
    %v588 = vunpack.c.l.b16 %v281
    %v589 = vunpack.c.h.b16 %v281
    %v590 = vunpack.c.l.b16 %v282
    %v591 = vunpack.c.h.b16 %v282
    %v592 = vunpack.c.l.b16 %v283
    %v593 = vunpack.c.l.b16 %v284
    %v594 = vunpack.c.h.b16 %v284
    %v595 = vunpack.c.l.b16 %v285
    %v596 = vunpack.c.h.b16 %v285
    %v597 = vunpack.c.l.b16 %v286
    %v598 = vunpack.c.h.b16 %v286
    %v599 = vunpack.c.l.b16 %v287
    %v600 = vunpack.c.h.b16 %v287
    %v601 = vunpack.c.l.b16 %v288
    %v602 = vunpack.c.h.b16 %v288
    %v603 = vunpack.c.l.b16 %v289
    %v604 = vunpack.c.h.b16 %v289
    %v605 = vunpack.c.l.b16 %v290
    %v606 = vunpack.c.h.b16 %v290
    %v607 = vunpack.c.l.b16 %v291
    %v608 = vunpack.c.l.b16 %v292
    %v609 = vunpack.c.h.b16 %v292
    %v610 = vunpack.c.l.b16 %v293
    %v611 = vunpack.c.h.b16 %v293
    %v612 = vunpack.c.l.b16 %v294
    %v613 = vunpack.c.h.b16 %v294
    %v614 = vunpack.c.l.b16 %v295
    %v615 = vunpack.c.h.b16 %v295
    %v616 = vunpack.c.l.b16 %v296
    %v617 = vunpack.c.h.b16 %v296
    %v618 = vunpack.c.l.b16 %v297
    %v619 = vunpack.c.h.b16 %v297
    %v620 = vunpack.c.l.b16 %v298
    %v621 = vunpack.c.h.b16 %v298
    %v622 = vunpack.c.l.b16 %v299
    %v623 = vunpack.c.l.b16 %v300
    %v624 = vunpack.c.h.b16 %v300
    %v625 = vunpack.c.l.b16 %v301
    %v626 = vunpack.c.h.b16 %v301
    %v627 = vunpack.c.l.b16 %v302
    %v628 = vunpack.c.h.b16 %v302
    %v629 = vunpack.c.l.b16 %v303
    %v630 = vunpack.c.h.b16 %v303
    %v631 = vunpack.c.l.b16 %v304
    %v632 = vunpack.c.h.b16 %v304
    %v633 = vunpack.c.l.b16 %v305
    %v634 = vunpack.c.h.b16 %v305
    %v635 = vunpack.c.l.b16 %v306
    %v636 = vunpack.c.h.b16 %v306
    %v637 = vunpack.c.l.b16 %v307
    %v638 = vunpack.c.l.b16 %v308
    %v639 = vunpack.c.h.b16 %v308
    %v640 = vunpack.c.l.b16 %v309
    %v641 = vunpack.c.h.b16 %v309
    %v642 = vunpack.c.l.b16 %v310
    %v643 = vunpack.c.h.b16 %v310
    %v644 = vunpack.c.l.b16 %v311
    %v645 = vunpack.c.h.b16 %v311
    %v646 = vunpack.c.l.b16 %v312
    %v647 = vunpack.c.h.b16 %v312
    %v648 = vunpack.c.l.b16 %v313
    %v649 = vunpack.c.h.b16 %v313
    %v650 = vunpack.c.l.b16 %v314
    %v651 = vunpack.c.h.b16 %v314
    %v652 = vunpack.c.l.b16 %v315
    %v653 = vunpack.c.l.b16 %v316
    %v654 = vunpack.c.h.b16 %v316
    %v655 = vunpack.c.l.b16 %v317
    %v656 = vunpack.c.h.b16 %v317
    %v657 = vunpack.c.l.b16 %v318
    %v658 = vunpack.c.h.b16 %v318
    %v659 = vunpack.c.l.b16 %v319
    %v660 = vunpack.c.h.b16 %v319
    %v661 = vunpack.c.l.b16 %v320
    %v662 = vunpack.c.h.b16 %v320
    %v663 = vunpack.c.l.b16 %v321
    %v664 = vunpack.c.h.b16 %v321
    %v665 = vunpack.c.l.b16 %v322
    %v666 = vunpack.c.h.b16 %v322
    %v667 = vunpack.c.l.b16 %v323
    %v668 = vpack.c.b16 %v533, %v518
    %v669 = vpack.c.b16 %v534, %v519
    %v670 = vpack.c.b16 %v535, %v520
    %v671 = vpack.c.b16 %v536, %v521
    %v672 = vpack.c.b16 %v537, %v522
    %v673 = vpack.c.b16 %v538, %v523
    %v674 = vpack.c.b16 %v539, %v524
    %v675 = vpack.c.b16 %v540, %v525
    %v676 = vpack.c.b16 %v541, %v526
    %v677 = vpack.c.b16 %v542, %v527
    %v678 = vpack.c.b16 %v543, %v528
    %v679 = vpack.c.b16 %v544, %v529
    %v680 = vpack.c.b16 %v545, %v530
    %v681 = vpack.c.b16 %v546, %v531
    %v682 = vpack.c.b16 %v547, %v532
    %v683 = vpack.c.b16 %v563, %v548
    %v684 = vpack.c.b16 %v564, %v549
    %v685 = vpack.c.b16 %v565, %v550
    %v686 = vpack.c.b16 %v566, %v551
    %v687 = vpack.c.b16 %v567, %v552
    %v688 = vpack.c.b16 %v568, %v553
    %v689 = vpack.c.b16 %v569, %v554
    %v690 = vpack.c.b16 %v570, %v555
    %v691 = vpack.c.b16 %v571, %v556
    %v692 = vpack.c.b16 %v572, %v557
    %v693 = vpack.c.b16 %v573, %v558
    %v694 = vpack.c.b16 %v574, %v559
    %v695 = vpack.c.b16 %v575, %v560
    %v696 = vpack.c.b16 %v576, %v561
    %v697 = vpack.c.b16 %v577, %v562
    %v698 = vpack.c.b16 %v593, %v578
    %v699 = vpack.c.b16 %v594, %v579
    %v700 = vpack.c.b16 %v595, %v580
    %v701 = vpack.c.b16 %v596, %v581
    %v702 = vpack.c.b16 %v597, %v582
    %v703 = vpack.c.b16 %v598, %v583
    %v704 = vpack.c.b16 %v599, %v584
    %v705 = vpack.c.b16 %v600, %v585
    %v706 = vpack.c.b16 %v601, %v586
    %v707 = vpack.c.b16 %v602, %v587
    %v708 = vpack.c.b16 %v603, %v588
    %v709 = vpack.c.b16 %v604, %v589
    %v710 = vpack.c.b16 %v605, %v590
    %v711 = vpack.c.b16 %v606, %v591
    %v712 = vpack.c.b16 %v607, %v592
    %v713 = vpack.c.b16 %v623, %v608
    %v714 = vpack.c.b16 %v624, %v609
    %v715 = vpack.c.b16 %v625, %v610
    %v716 = vpack.c.b16 %v626, %v611
    %v717 = vpack.c.b16 %v627, %v612
    %v718 = vpack.c.b16 %v628, %v613
    %v719 = vpack.c.b16 %v629, %v614
    %v720 = vpack.c.b16 %v630, %v615
    %v721 = vpack.c.b16 %v631, %v616
    %v722 = vpack.c.b16 %v632, %v617
    %v723 = vpack.c.b16 %v633, %v618
    %v724 = vpack.c.b16 %v634, %v619
    %v725 = vpack.c.b16 %v635, %v620
    %v726 = vpack.c.b16 %v636, %v621
    %v727 = vpack.c.b16 %v637, %v622
    %v728 = vpack.c.b16 %v653, %v638
    %v729 = vpack.c.b16 %v654, %v639
    %v730 = vpack.c.b16 %v655, %v640
    %v731 = vpack.c.b16 %v656, %v641
    %v732 = vpack.c.b16 %v657, %v642
    %v733 = vpack.c.b16 %v658, %v643
    %v734 = vpack.c.b16 %v659, %v644
    %v735 = vpack.c.b16 %v660, %v645
    %v736 = vpack.c.b16 %v661, %v646
    %v737 = vpack.c.b16 %v662, %v647
    %v738 = vpack.c.b16 %v663, %v648
    %v739 = vpack.c.b16 %v664, %v649
    %v740 = vpack.c.b16 %v665, %v650
    %v741 = vpack.c.b16 %v666, %v651
    %v742 = vpack.c.b16 %v667, %v652
    %vm813 = vcmask 261120
    %v815 = vsel %vm813, %v682, 0
    %v818 = vsel %vm813, %v697, 0
    %v821 = vsel %vm813, %v712, 0
    %v824 = vsel %vm813, %v727, 0
    %v827 = vsel %vm813, %v742, 0
    %829 = vmatprep.subr.bf16.mxu0 0
    %830 = vmatpush1.bf16.msra.mxu0 %v331
    %831 = vmatprep.subr.bf16.mxu0 0
    %832 = vmatpush1.bf16.msra.mxu0 %v330
    %833 = vmatprep.subr.bf16.mxu0 0
    %834 = vmatpush1.bf16.msra.mxu0 %v329
    %835 = vmatprep.subr.bf16.mxu0 0
    %836 = vmatpush1.bf16.msra.mxu0 %v328
    %837 = vmatprep.subr.bf16.mxu0 0
    %838 = vmatpush1.bf16.msra.mxu0 %v327
    %839 = vmatprep.subr.bf16.mxu0 0
    %840 = vmatpush1.bf16.msra.mxu0 %v326
    %841 = vmatprep.subr.bf16.mxu0 0
    %842 = vmatpush1.bf16.msra.mxu0 %v325
    %843 = vmatprep.subr.bf16.mxu0 0
    %844 = vmatpush1.bf16.msra.mxu0 %v324
    %845 = vmatprep.subr.bf16.mxu0 0
    %846 = vmatpush2.bf16.msra.mxu0 %v339
    %847 = vmatprep.subr.bf16.mxu0 0
    %848 = vmatpush2.bf16.msra.mxu0 %v338
    %849 = vmatprep.subr.bf16.mxu0 0
    %850 = vmatpush2.bf16.msra.mxu0 %v337
    %851 = vmatprep.subr.bf16.mxu0 0
    %852 = vmatpush2.bf16.msra.mxu0 %v336
    %853 = vmatprep.subr.bf16.mxu0 0
    %854 = vmatpush2.bf16.msra.mxu0 %v335
    %855 = vmatprep.subr.bf16.mxu0 0
    %856 = vmatpush2.bf16.msra.mxu0 %v334
    %857 = vmatprep.subr.bf16.mxu0 0
    %858 = vmatpush2.bf16.msra.mxu0 %v333
    %859 = vmatprep.subr.bf16.mxu0 0
    %860 = vmatpush2.bf16.msra.mxu0 %v332
    %861 = vmatprep.mubr.bf16.mxu0 %v669
    %862 = vmatmul.mubr.bf16.gmra.mxu0 %v668
    %v863 = vpop.f32.mrf.mxu0
    %v864 = vadd.f32 0.0, %v863
    %v865 = vpop.f32.mrf.mxu0
    %v866 = vpop.f32.mrf.mxu0
    %v867 = vadd.f32 0.0, %v866
    %v868 = vpop.f32.mrf.mxu0
    %869 = vmatprep.mubr.bf16.mxu0 %v684
    %870 = vmatmul.mubr.bf16.gmra.mxu0 %v683
    %v871 = vpop.f32.mrf.mxu0
    %v872 = vadd.f32 0.0, %v871
    %v873 = vpop.f32.mrf.mxu0
    %v874 = vpop.f32.mrf.mxu0
    %v875 = vadd.f32 0.0, %v874
    %v876 = vpop.f32.mrf.mxu0
    %877 = vmatprep.mubr.bf16.mxu0 %v699
    %878 = vmatmul.mubr.bf16.gmra.mxu0 %v698
    %v879 = vpop.f32.mrf.mxu0
    %v880 = vadd.f32 0.0, %v879
    %v881 = vpop.f32.mrf.mxu0
    %v882 = vpop.f32.mrf.mxu0
    %v883 = vadd.f32 0.0, %v882
    %v884 = vpop.f32.mrf.mxu0
    %885 = vmatprep.mubr.bf16.mxu0 %v714
    %886 = vmatmul.mubr.bf16.gmra.mxu0 %v713
    %v887 = vpop.f32.mrf.mxu0
    %v888 = vadd.f32 0.0, %v887
    %v889 = vpop.f32.mrf.mxu0
    %v890 = vpop.f32.mrf.mxu0
    %v891 = vadd.f32 0.0, %v890
    %v892 = vpop.f32.mrf.mxu0
    %893 = vmatprep.mubr.bf16.mxu0 %v729
    %894 = vmatmul.mubr.bf16.gmra.mxu0 %v728
    %v895 = vpop.f32.mrf.mxu0
    %v896 = vadd.f32 0.0, %v895
    %v897 = vpop.f32.mrf.mxu0
    %v898 = vpop.f32.mrf.mxu0
    %v899 = vadd.f32 0.0, %v898
    %v900 = vpop.f32.mrf.mxu0
    %901 = vdwg.mxu0
    %902 = vmatprep.subr.bf16.mxu0 0
    %903 = vmatpush1.bf16.msra.mxu0 %v347
    %904 = vmatprep.subr.bf16.mxu0 0
    %905 = vmatpush1.bf16.msra.mxu0 %v346
    %906 = vmatprep.subr.bf16.mxu0 0
    %907 = vmatpush1.bf16.msra.mxu0 %v345
    %908 = vmatprep.subr.bf16.mxu0 0
    %909 = vmatpush1.bf16.msra.mxu0 %v344
    %910 = vmatprep.subr.bf16.mxu0 0
    %911 = vmatpush1.bf16.msra.mxu0 %v343
    %912 = vmatprep.subr.bf16.mxu0 0
    %913 = vmatpush1.bf16.msra.mxu0 %v342
    %914 = vmatprep.subr.bf16.mxu0 0
    %915 = vmatpush1.bf16.msra.mxu0 %v341
    %916 = vmatprep.subr.bf16.mxu0 0
    %917 = vmatpush1.bf16.msra.mxu0 %v340
    %918 = vmatprep.subr.bf16.mxu0 0
    %919 = vmatpush2.bf16.msra.mxu0 %v355
    %920 = vmatprep.subr.bf16.mxu0 0
    %921 = vmatpush2.bf16.msra.mxu0 %v354
    %922 = vmatprep.subr.bf16.mxu0 0
    %923 = vmatpush2.bf16.msra.mxu0 %v353
    %924 = vmatprep.subr.bf16.mxu0 0
    %925 = vmatpush2.bf16.msra.mxu0 %v352
    %926 = vmatprep.subr.bf16.mxu0 0
    %927 = vmatpush2.bf16.msra.mxu0 %v351
    %928 = vmatprep.subr.bf16.mxu0 0
    %929 = vmatpush2.bf16.msra.mxu0 %v350
    %930 = vmatprep.subr.bf16.mxu0 0
    %931 = vmatpush2.bf16.msra.mxu0 %v349
    %932 = vmatprep.subr.bf16.mxu0 0
    %933 = vmatpush2.bf16.msra.mxu0 %v348
    %934 = vmatprep.mubr.bf16.mxu0 %v671
    %935 = vmatmul.mubr.bf16.gmra.mxu0 %v670
    %v936 = vpop.f32.mrf.mxu0
    %v937 = vadd.f32 %v864, %v936
    %v938 = vpop.f32.mrf.mxu0
    %v939 = vpop.f32.mrf.mxu0
    %v940 = vadd.f32 %v867, %v939
    %v941 = vpop.f32.mrf.mxu0
    %942 = vmatprep.mubr.bf16.mxu0 %v686
    %943 = vmatmul.mubr.bf16.gmra.mxu0 %v685
    %v944 = vpop.f32.mrf.mxu0
    %v945 = vadd.f32 %v872, %v944
    %v946 = vpop.f32.mrf.mxu0
    %v947 = vpop.f32.mrf.mxu0
    %v948 = vadd.f32 %v875, %v947
    %v949 = vpop.f32.mrf.mxu0
    %950 = vmatprep.mubr.bf16.mxu0 %v701
    %951 = vmatmul.mubr.bf16.gmra.mxu0 %v700
    %v952 = vpop.f32.mrf.mxu0
    %v953 = vadd.f32 %v880, %v952
    %v954 = vpop.f32.mrf.mxu0
    %v955 = vpop.f32.mrf.mxu0
    %v956 = vadd.f32 %v883, %v955
    %v957 = vpop.f32.mrf.mxu0
    %958 = vmatprep.mubr.bf16.mxu0 %v716
    %959 = vmatmul.mubr.bf16.gmra.mxu0 %v715
    %v960 = vpop.f32.mrf.mxu0
    %v961 = vadd.f32 %v888, %v960
    %v962 = vpop.f32.mrf.mxu0
    %v963 = vpop.f32.mrf.mxu0
    %v964 = vadd.f32 %v891, %v963
    %v965 = vpop.f32.mrf.mxu0
    %966 = vmatprep.mubr.bf16.mxu0 %v731
    %967 = vmatmul.mubr.bf16.gmra.mxu0 %v730
    %v968 = vpop.f32.mrf.mxu0
    %v969 = vadd.f32 %v896, %v968
    %v970 = vpop.f32.mrf.mxu0
    %v971 = vpop.f32.mrf.mxu0
    %v972 = vadd.f32 %v899, %v971
    %v973 = vpop.f32.mrf.mxu0
    %974 = vdwg.mxu0
    %975 = vmatprep.subr.bf16.mxu0 0
    %976 = vmatpush1.bf16.msra.mxu0 %v363
    %977 = vmatprep.subr.bf16.mxu0 0
    %978 = vmatpush1.bf16.msra.mxu0 %v362
    %979 = vmatprep.subr.bf16.mxu0 0
    %980 = vmatpush1.bf16.msra.mxu0 %v361
    %981 = vmatprep.subr.bf16.mxu0 0
    %982 = vmatpush1.bf16.msra.mxu0 %v360
    %983 = vmatprep.subr.bf16.mxu0 0
    %984 = vmatpush1.bf16.msra.mxu0 %v359
    %985 = vmatprep.subr.bf16.mxu0 0
    %986 = vmatpush1.bf16.msra.mxu0 %v358
    %987 = vmatprep.subr.bf16.mxu0 0
    %988 = vmatpush1.bf16.msra.mxu0 %v357
    %989 = vmatprep.subr.bf16.mxu0 0
    %990 = vmatpush1.bf16.msra.mxu0 %v356
    %991 = vmatprep.subr.bf16.mxu0 0
    %992 = vmatpush2.bf16.msra.mxu0 %v371
    %993 = vmatprep.subr.bf16.mxu0 0
    %994 = vmatpush2.bf16.msra.mxu0 %v370
    %995 = vmatprep.subr.bf16.mxu0 0
    %996 = vmatpush2.bf16.msra.mxu0 %v369
    %997 = vmatprep.subr.bf16.mxu0 0
    %998 = vmatpush2.bf16.msra.mxu0 %v368
    %999 = vmatprep.subr.bf16.mxu0 0
    %1000 = vmatpush2.bf16.msra.mxu0 %v367
    %1001 = vmatprep.subr.bf16.mxu0 0
    %1002 = vmatpush2.bf16.msra.mxu0 %v366
    %1003 = vmatprep.subr.bf16.mxu0 0
    %1004 = vmatpush2.bf16.msra.mxu0 %v365
    %1005 = vmatprep.subr.bf16.mxu0 0
    %1006 = vmatpush2.bf16.msra.mxu0 %v364
    %1007 = vmatprep.mubr.bf16.mxu0 %v673
    %1008 = vmatmul.mubr.bf16.gmra.mxu0 %v672
    %v1009 = vpop.f32.mrf.mxu0
    %v1010 = vadd.f32 %v937, %v1009
    %v1011 = vpop.f32.mrf.mxu0
    %v1012 = vpop.f32.mrf.mxu0
    %v1013 = vadd.f32 %v940, %v1012
    %v1014 = vpop.f32.mrf.mxu0
    %1015 = vmatprep.mubr.bf16.mxu0 %v688
    %1016 = vmatmul.mubr.bf16.gmra.mxu0 %v687
    %v1017 = vpop.f32.mrf.mxu0
    %v1018 = vadd.f32 %v945, %v1017
    %v1019 = vpop.f32.mrf.mxu0
    %v1020 = vpop.f32.mrf.mxu0
    %v1021 = vadd.f32 %v948, %v1020
    %v1022 = vpop.f32.mrf.mxu0
    %1023 = vmatprep.mubr.bf16.mxu0 %v703
    %1024 = vmatmul.mubr.bf16.gmra.mxu0 %v702
    %v1025 = vpop.f32.mrf.mxu0
    %v1026 = vadd.f32 %v953, %v1025
    %v1027 = vpop.f32.mrf.mxu0
    %v1028 = vpop.f32.mrf.mxu0
    %v1029 = vadd.f32 %v956, %v1028
    %v1030 = vpop.f32.mrf.mxu0
    %1031 = vmatprep.mubr.bf16.mxu0 %v718
    %1032 = vmatmul.mubr.bf16.gmra.mxu0 %v717
    %v1033 = vpop.f32.mrf.mxu0
    %v1034 = vadd.f32 %v961, %v1033
    %v1035 = vpop.f32.mrf.mxu0
    %v1036 = vpop.f32.mrf.mxu0
    %v1037 = vadd.f32 %v964, %v1036
    %v1038 = vpop.f32.mrf.mxu0
    %1039 = vmatprep.mubr.bf16.mxu0 %v733
    %1040 = vmatmul.mubr.bf16.gmra.mxu0 %v732
    %v1041 = vpop.f32.mrf.mxu0
    %v1042 = vadd.f32 %v969, %v1041
    %v1043 = vpop.f32.mrf.mxu0
    %v1044 = vpop.f32.mrf.mxu0
    %v1045 = vadd.f32 %v972, %v1044
    %v1046 = vpop.f32.mrf.mxu0
    %1047 = vdwg.mxu0
    %1048 = vmatprep.subr.bf16.mxu0 0
    %1049 = vmatpush1.bf16.msra.mxu0 %v379
    %1050 = vmatprep.subr.bf16.mxu0 0
    %1051 = vmatpush1.bf16.msra.mxu0 %v378
    %1052 = vmatprep.subr.bf16.mxu0 0
    %1053 = vmatpush1.bf16.msra.mxu0 %v377
    %1054 = vmatprep.subr.bf16.mxu0 0
    %1055 = vmatpush1.bf16.msra.mxu0 %v376
    %1056 = vmatprep.subr.bf16.mxu0 0
    %1057 = vmatpush1.bf16.msra.mxu0 %v375
    %1058 = vmatprep.subr.bf16.mxu0 0
    %1059 = vmatpush1.bf16.msra.mxu0 %v374
    %1060 = vmatprep.subr.bf16.mxu0 0
    %1061 = vmatpush1.bf16.msra.mxu0 %v373
    %1062 = vmatprep.subr.bf16.mxu0 0
    %1063 = vmatpush1.bf16.msra.mxu0 %v372
    %1064 = vmatprep.subr.bf16.mxu0 0
    %1065 = vmatpush2.bf16.msra.mxu0 %v387
    %1066 = vmatprep.subr.bf16.mxu0 0
    %1067 = vmatpush2.bf16.msra.mxu0 %v386
    %1068 = vmatprep.subr.bf16.mxu0 0
    %1069 = vmatpush2.bf16.msra.mxu0 %v385
    %1070 = vmatprep.subr.bf16.mxu0 0
    %1071 = vmatpush2.bf16.msra.mxu0 %v384
    %1072 = vmatprep.subr.bf16.mxu0 0
    %1073 = vmatpush2.bf16.msra.mxu0 %v383
    %1074 = vmatprep.subr.bf16.mxu0 0
    %1075 = vmatpush2.bf16.msra.mxu0 %v382
    %1076 = vmatprep.subr.bf16.mxu0 0
    %1077 = vmatpush2.bf16.msra.mxu0 %v381
    %1078 = vmatprep.subr.bf16.mxu0 0
    %1079 = vmatpush2.bf16.msra.mxu0 %v380
    %1080 = vmatprep.mubr.bf16.mxu0 %v675
    %1081 = vmatmul.mubr.bf16.gmra.mxu0 %v674
    %v1082 = vpop.f32.mrf.mxu0
    %v1083 = vadd.f32 %v1010, %v1082
    %v1084 = vpop.f32.mrf.mxu0
    %v1085 = vpop.f32.mrf.mxu0
    %v1086 = vadd.f32 %v1013, %v1085
    %v1087 = vpop.f32.mrf.mxu0
    %1088 = vmatprep.mubr.bf16.mxu0 %v690
    %1089 = vmatmul.mubr.bf16.gmra.mxu0 %v689
    %v1090 = vpop.f32.mrf.mxu0
    %v1091 = vadd.f32 %v1018, %v1090
    %v1092 = vpop.f32.mrf.mxu0
    %v1093 = vpop.f32.mrf.mxu0
    %v1094 = vadd.f32 %v1021, %v1093
    %v1095 = vpop.f32.mrf.mxu0
    %1096 = vmatprep.mubr.bf16.mxu0 %v705
    %1097 = vmatmul.mubr.bf16.gmra.mxu0 %v704
    %v1098 = vpop.f32.mrf.mxu0
    %v1099 = vadd.f32 %v1026, %v1098
    %v1100 = vpop.f32.mrf.mxu0
    %v1101 = vpop.f32.mrf.mxu0
    %v1102 = vadd.f32 %v1029, %v1101
    %v1103 = vpop.f32.mrf.mxu0
    %1104 = vmatprep.mubr.bf16.mxu0 %v720
    %1105 = vmatmul.mubr.bf16.gmra.mxu0 %v719
    %v1106 = vpop.f32.mrf.mxu0
    %v1107 = vadd.f32 %v1034, %v1106
    %v1108 = vpop.f32.mrf.mxu0
    %v1109 = vpop.f32.mrf.mxu0
    %v1110 = vadd.f32 %v1037, %v1109
    %v1111 = vpop.f32.mrf.mxu0
    %1112 = vmatprep.mubr.bf16.mxu0 %v735
    %1113 = vmatmul.mubr.bf16.gmra.mxu0 %v734
    %v1114 = vpop.f32.mrf.mxu0
    %v1115 = vadd.f32 %v1042, %v1114
    %v1116 = vpop.f32.mrf.mxu0
    %v1117 = vpop.f32.mrf.mxu0
    %v1118 = vadd.f32 %v1045, %v1117
    %v1119 = vpop.f32.mrf.mxu0
    %1120 = vdwg.mxu0
    %1121 = vmatprep.subr.bf16.mxu0 0
    %1122 = vmatpush1.bf16.msra.mxu0 %v395
    %1123 = vmatprep.subr.bf16.mxu0 0
    %1124 = vmatpush1.bf16.msra.mxu0 %v394
    %1125 = vmatprep.subr.bf16.mxu0 0
    %1126 = vmatpush1.bf16.msra.mxu0 %v393
    %1127 = vmatprep.subr.bf16.mxu0 0
    %1128 = vmatpush1.bf16.msra.mxu0 %v392
    %1129 = vmatprep.subr.bf16.mxu0 0
    %1130 = vmatpush1.bf16.msra.mxu0 %v391
    %1131 = vmatprep.subr.bf16.mxu0 0
    %1132 = vmatpush1.bf16.msra.mxu0 %v390
    %1133 = vmatprep.subr.bf16.mxu0 0
    %1134 = vmatpush1.bf16.msra.mxu0 %v389
    %1135 = vmatprep.subr.bf16.mxu0 0
    %1136 = vmatpush1.bf16.msra.mxu0 %v388
    %1137 = vmatprep.subr.bf16.mxu0 0
    %1138 = vmatpush2.bf16.msra.mxu0 %v403
    %1139 = vmatprep.subr.bf16.mxu0 0
    %1140 = vmatpush2.bf16.msra.mxu0 %v402
    %1141 = vmatprep.subr.bf16.mxu0 0
    %1142 = vmatpush2.bf16.msra.mxu0 %v401
    %1143 = vmatprep.subr.bf16.mxu0 0
    %1144 = vmatpush2.bf16.msra.mxu0 %v400
    %1145 = vmatprep.subr.bf16.mxu0 0
    %1146 = vmatpush2.bf16.msra.mxu0 %v399
    %1147 = vmatprep.subr.bf16.mxu0 0
    %1148 = vmatpush2.bf16.msra.mxu0 %v398
    %1149 = vmatprep.subr.bf16.mxu0 0
    %1150 = vmatpush2.bf16.msra.mxu0 %v397
    %1151 = vmatprep.subr.bf16.mxu0 0
    %1152 = vmatpush2.bf16.msra.mxu0 %v396
    %1153 = vmatprep.mubr.bf16.mxu0 %v677
    %1154 = vmatmul.mubr.bf16.gmra.mxu0 %v676
    %v1155 = vpop.f32.mrf.mxu0
    %v1156 = vadd.f32 %v1083, %v1155
    %v1157 = vpop.f32.mrf.mxu0
    %v1158 = vpop.f32.mrf.mxu0
    %v1159 = vadd.f32 %v1086, %v1158
    %v1160 = vpop.f32.mrf.mxu0
    %1161 = vmatprep.mubr.bf16.mxu0 %v692
    %1162 = vmatmul.mubr.bf16.gmra.mxu0 %v691
    %v1163 = vpop.f32.mrf.mxu0
    %v1164 = vadd.f32 %v1091, %v1163
    %v1165 = vpop.f32.mrf.mxu0
    %v1166 = vpop.f32.mrf.mxu0
    %v1167 = vadd.f32 %v1094, %v1166
    %v1168 = vpop.f32.mrf.mxu0
    %1169 = vmatprep.mubr.bf16.mxu0 %v707
    %1170 = vmatmul.mubr.bf16.gmra.mxu0 %v706
    %v1171 = vpop.f32.mrf.mxu0
    %v1172 = vadd.f32 %v1099, %v1171
    %v1173 = vpop.f32.mrf.mxu0
    %v1174 = vpop.f32.mrf.mxu0
    %v1175 = vadd.f32 %v1102, %v1174
    %v1176 = vpop.f32.mrf.mxu0
    %1177 = vmatprep.mubr.bf16.mxu0 %v722
    %1178 = vmatmul.mubr.bf16.gmra.mxu0 %v721
    %v1179 = vpop.f32.mrf.mxu0
    %v1180 = vadd.f32 %v1107, %v1179
    %v1181 = vpop.f32.mrf.mxu0
    %v1182 = vpop.f32.mrf.mxu0
    %v1183 = vadd.f32 %v1110, %v1182
    %v1184 = vpop.f32.mrf.mxu0
    %1185 = vmatprep.mubr.bf16.mxu0 %v737
    %1186 = vmatmul.mubr.bf16.gmra.mxu0 %v736
    %v1187 = vpop.f32.mrf.mxu0
    %v1188 = vadd.f32 %v1115, %v1187
    %v1189 = vpop.f32.mrf.mxu0
    %v1190 = vpop.f32.mrf.mxu0
    %v1191 = vadd.f32 %v1118, %v1190
    %v1192 = vpop.f32.mrf.mxu0
    %1193 = vdwg.mxu0
    %1194 = vmatprep.subr.bf16.mxu0 0
    %1195 = vmatpush1.bf16.msra.mxu0 %v411
    %1196 = vmatprep.subr.bf16.mxu0 0
    %1197 = vmatpush1.bf16.msra.mxu0 %v410
    %1198 = vmatprep.subr.bf16.mxu0 0
    %1199 = vmatpush1.bf16.msra.mxu0 %v409
    %1200 = vmatprep.subr.bf16.mxu0 0
    %1201 = vmatpush1.bf16.msra.mxu0 %v408
    %1202 = vmatprep.subr.bf16.mxu0 0
    %1203 = vmatpush1.bf16.msra.mxu0 %v407
    %1204 = vmatprep.subr.bf16.mxu0 0
    %1205 = vmatpush1.bf16.msra.mxu0 %v406
    %1206 = vmatprep.subr.bf16.mxu0 0
    %1207 = vmatpush1.bf16.msra.mxu0 %v405
    %1208 = vmatprep.subr.bf16.mxu0 0
    %1209 = vmatpush1.bf16.msra.mxu0 %v404
    %1210 = vmatprep.subr.bf16.mxu0 0
    %1211 = vmatpush2.bf16.msra.mxu0 %v419
    %1212 = vmatprep.subr.bf16.mxu0 0
    %1213 = vmatpush2.bf16.msra.mxu0 %v418
    %1214 = vmatprep.subr.bf16.mxu0 0
    %1215 = vmatpush2.bf16.msra.mxu0 %v417
    %1216 = vmatprep.subr.bf16.mxu0 0
    %1217 = vmatpush2.bf16.msra.mxu0 %v416
    %1218 = vmatprep.subr.bf16.mxu0 0
    %1219 = vmatpush2.bf16.msra.mxu0 %v415
    %1220 = vmatprep.subr.bf16.mxu0 0
    %1221 = vmatpush2.bf16.msra.mxu0 %v414
    %1222 = vmatprep.subr.bf16.mxu0 0
    %1223 = vmatpush2.bf16.msra.mxu0 %v413
    %1224 = vmatprep.subr.bf16.mxu0 0
    %1225 = vmatpush2.bf16.msra.mxu0 %v412
    %1226 = vmatprep.mubr.bf16.mxu0 %v679
    %1227 = vmatmul.mubr.bf16.gmra.mxu0 %v678
    %v1228 = vpop.f32.mrf.mxu0
    %v1229 = vadd.f32 %v1156, %v1228
    %v1230 = vpop.f32.mrf.mxu0
    %v1231 = vpop.f32.mrf.mxu0
    %v1232 = vadd.f32 %v1159, %v1231
    %v1233 = vpop.f32.mrf.mxu0
    %1234 = vmatprep.mubr.bf16.mxu0 %v694
    %1235 = vmatmul.mubr.bf16.gmra.mxu0 %v693
    %v1236 = vpop.f32.mrf.mxu0
    %v1237 = vadd.f32 %v1164, %v1236
    %v1238 = vpop.f32.mrf.mxu0
    %v1239 = vpop.f32.mrf.mxu0
    %v1240 = vadd.f32 %v1167, %v1239
    %v1241 = vpop.f32.mrf.mxu0
    %1242 = vmatprep.mubr.bf16.mxu0 %v709
    %1243 = vmatmul.mubr.bf16.gmra.mxu0 %v708
    %v1244 = vpop.f32.mrf.mxu0
    %v1245 = vadd.f32 %v1172, %v1244
    %v1246 = vpop.f32.mrf.mxu0
    %v1247 = vpop.f32.mrf.mxu0
    %v1248 = vadd.f32 %v1175, %v1247
    %v1249 = vpop.f32.mrf.mxu0
    %1250 = vmatprep.mubr.bf16.mxu0 %v724
    %1251 = vmatmul.mubr.bf16.gmra.mxu0 %v723
    %v1252 = vpop.f32.mrf.mxu0
    %v1253 = vadd.f32 %v1180, %v1252
    %v1254 = vpop.f32.mrf.mxu0
    %v1255 = vpop.f32.mrf.mxu0
    %v1256 = vadd.f32 %v1183, %v1255
    %v1257 = vpop.f32.mrf.mxu0
    %1258 = vmatprep.mubr.bf16.mxu0 %v739
    %1259 = vmatmul.mubr.bf16.gmra.mxu0 %v738
    %v1260 = vpop.f32.mrf.mxu0
    %v1261 = vadd.f32 %v1188, %v1260
    %v1262 = vpop.f32.mrf.mxu0
    %v1263 = vpop.f32.mrf.mxu0
    %v1264 = vadd.f32 %v1191, %v1263
    %v1265 = vpop.f32.mrf.mxu0
    %1266 = vdwg.mxu0
    %1267 = vmatprep.subr.bf16.mxu0 0
    %1268 = vmatpush1.bf16.msra.mxu0 %v427
    %1269 = vmatprep.subr.bf16.mxu0 0
    %1270 = vmatpush1.bf16.msra.mxu0 %v426
    %1271 = vmatprep.subr.bf16.mxu0 0
    %1272 = vmatpush1.bf16.msra.mxu0 %v425
    %1273 = vmatprep.subr.bf16.mxu0 0
    %1274 = vmatpush1.bf16.msra.mxu0 %v424
    %1275 = vmatprep.subr.bf16.mxu0 0
    %1276 = vmatpush1.bf16.msra.mxu0 %v423
    %1277 = vmatprep.subr.bf16.mxu0 0
    %1278 = vmatpush1.bf16.msra.mxu0 %v422
    %1279 = vmatprep.subr.bf16.mxu0 0
    %1280 = vmatpush1.bf16.msra.mxu0 %v421
    %1281 = vmatprep.subr.bf16.mxu0 0
    %1282 = vmatpush1.bf16.msra.mxu0 %v420
    %1283 = vmatprep.subr.bf16.mxu0 0
    %1284 = vmatpush2.bf16.msra.mxu0 %v435
    %1285 = vmatprep.subr.bf16.mxu0 0
    %1286 = vmatpush2.bf16.msra.mxu0 %v434
    %1287 = vmatprep.subr.bf16.mxu0 0
    %1288 = vmatpush2.bf16.msra.mxu0 %v433
    %1289 = vmatprep.subr.bf16.mxu0 0
    %1290 = vmatpush2.bf16.msra.mxu0 %v432
    %1291 = vmatprep.subr.bf16.mxu0 0
    %1292 = vmatpush2.bf16.msra.mxu0 %v431
    %1293 = vmatprep.subr.bf16.mxu0 0
    %1294 = vmatpush2.bf16.msra.mxu0 %v430
    %1295 = vmatprep.subr.bf16.mxu0 0
    %1296 = vmatpush2.bf16.msra.mxu0 %v429
    %1297 = vmatprep.subr.bf16.mxu0 0
    %1298 = vmatpush2.bf16.msra.mxu0 %v428
    %1299 = vmatprep.mubr.bf16.mxu0 %v681
    %1300 = vmatmul.mubr.bf16.gmra.mxu0 %v680
    %v1301 = vpop.f32.mrf.mxu0
    %v1302 = vadd.f32 %v1229, %v1301
    %v1303 = vpop.f32.mrf.mxu0
    %v1304 = vpop.f32.mrf.mxu0
    %v1305 = vadd.f32 %v1232, %v1304
    %v1306 = vpop.f32.mrf.mxu0
    %1307 = vmatprep.mubr.bf16.mxu0 %v696
    %1308 = vmatmul.mubr.bf16.gmra.mxu0 %v695
    %v1309 = vpop.f32.mrf.mxu0
    %v1310 = vadd.f32 %v1237, %v1309
    %v1311 = vpop.f32.mrf.mxu0
    %v1312 = vpop.f32.mrf.mxu0
    %v1313 = vadd.f32 %v1240, %v1312
    %v1314 = vpop.f32.mrf.mxu0
    %1315 = vmatprep.mubr.bf16.mxu0 %v711
    %1316 = vmatmul.mubr.bf16.gmra.mxu0 %v710
    %v1317 = vpop.f32.mrf.mxu0
    %v1318 = vadd.f32 %v1245, %v1317
    %v1319 = vpop.f32.mrf.mxu0
    %v1320 = vpop.f32.mrf.mxu0
    %v1321 = vadd.f32 %v1248, %v1320
    %v1322 = vpop.f32.mrf.mxu0
    %1323 = vmatprep.mubr.bf16.mxu0 %v726
    %1324 = vmatmul.mubr.bf16.gmra.mxu0 %v725
    %v1325 = vpop.f32.mrf.mxu0
    %v1326 = vadd.f32 %v1253, %v1325
    %v1327 = vpop.f32.mrf.mxu0
    %v1328 = vpop.f32.mrf.mxu0
    %v1329 = vadd.f32 %v1256, %v1328
    %v1330 = vpop.f32.mrf.mxu0
    %1331 = vmatprep.mubr.bf16.mxu0 %v741
    %1332 = vmatmul.mubr.bf16.gmra.mxu0 %v740
    %v1333 = vpop.f32.mrf.mxu0
    %v1334 = vadd.f32 %v1261, %v1333
    %v1335 = vpop.f32.mrf.mxu0
    %v1336 = vpop.f32.mrf.mxu0
    %v1337 = vadd.f32 %v1264, %v1336
    %v1338 = vpop.f32.mrf.mxu0
    %1339 = vdwg.mxu0
    %1340 = vmatprep.subr.bf16.mxu0 0
    %1341 = vmatpush1.bf16.msra.mxu0 0
    %1342 = vmatprep.subr.bf16.mxu0 0
    %1343 = vmatpush1.bf16.msra.mxu0 0
    %1344 = vmatprep.subr.bf16.mxu0 0
    %1345 = vmatpush1.bf16.msra.mxu0 0
    %1346 = vmatprep.subr.bf16.mxu0 0
    %1347 = vmatpush1.bf16.msra.mxu0 0
    %1348 = vmatprep.subr.bf16.mxu0 0
    %1349 = vmatpush1.bf16.msra.mxu0 0
    %1350 = vmatprep.subr.bf16.mxu0 0
    %1351 = vmatpush1.bf16.msra.mxu0 0
    %1352 = vmatprep.subr.bf16.mxu0 0
    %1353 = vmatpush1.bf16.msra.mxu0 %v437
    %1354 = vmatprep.subr.bf16.mxu0 0
    %1355 = vmatpush1.bf16.msra.mxu0 %v436
    %1356 = vmatprep.subr.bf16.mxu0 0
    %1357 = vmatpush2.bf16.msra.mxu0 0
    %1358 = vmatprep.subr.bf16.mxu0 0
    %1359 = vmatpush2.bf16.msra.mxu0 0
    %1360 = vmatprep.subr.bf16.mxu0 0
    %1361 = vmatpush2.bf16.msra.mxu0 0
    %1362 = vmatprep.subr.bf16.mxu0 0
    %1363 = vmatpush2.bf16.msra.mxu0 0
    %1364 = vmatprep.subr.bf16.mxu0 0
    %1365 = vmatpush2.bf16.msra.mxu0 0
    %1366 = vmatprep.subr.bf16.mxu0 0
    %1367 = vmatpush2.bf16.msra.mxu0 0
    %1368 = vmatprep.subr.bf16.mxu0 0
    %1369 = vmatpush2.bf16.msra.mxu0 0
    %1370 = vmatprep.subr.bf16.mxu0 0
    %1371 = vmatpush2.bf16.msra.mxu0 0
    %1372 = vmatprep.mubr.bf16.mxu0 0
    %1373 = vmatmul.mubr.bf16.gmra.mxu0 %v815
    %v1374 = vpop.f32.mrf.mxu0
    %v1375 = vadd.f32 %v1302, %v1374
    %v1376 = vpop.f32.mrf.mxu0
    %v1377 = vpop.f32.mrf.mxu0
    %v1378 = vadd.f32 %v1305, %v1377
    %v1379 = vpop.f32.mrf.mxu0
    %1380 = vmatprep.mubr.bf16.mxu0 0
    %1381 = vmatmul.mubr.bf16.gmra.mxu0 %v818
    %v1382 = vpop.f32.mrf.mxu0
    %v1383 = vadd.f32 %v1310, %v1382
    %v1384 = vpop.f32.mrf.mxu0
    %v1385 = vpop.f32.mrf.mxu0
    %v1386 = vadd.f32 %v1313, %v1385
    %v1387 = vpop.f32.mrf.mxu0
    %1388 = vmatprep.mubr.bf16.mxu0 0
    %1389 = vmatmul.mubr.bf16.gmra.mxu0 %v821
    %v1390 = vpop.f32.mrf.mxu0
    %v1391 = vadd.f32 %v1318, %v1390
    %v1392 = vpop.f32.mrf.mxu0
    %v1393 = vpop.f32.mrf.mxu0
    %v1394 = vadd.f32 %v1321, %v1393
    %v1395 = vpop.f32.mrf.mxu0
    %1396 = vmatprep.mubr.bf16.mxu0 0
    %1397 = vmatmul.mubr.bf16.gmra.mxu0 %v824
    %v1398 = vpop.f32.mrf.mxu0
    %v1399 = vadd.f32 %v1326, %v1398
    %v1400 = vpop.f32.mrf.mxu0
    %v1401 = vpop.f32.mrf.mxu0
    %v1402 = vadd.f32 %v1329, %v1401
    %v1403 = vpop.f32.mrf.mxu0
    %1404 = vmatprep.mubr.bf16.mxu0 0
    %1405 = vmatmul.mubr.bf16.gmra.mxu0 %v827
    %v1406 = vpop.f32.mrf.mxu0
    %v1407 = vadd.f32 %v1334, %v1406
    %v1408 = vpop.f32.mrf.mxu0
    %v1409 = vpop.f32.mrf.mxu0
    %v1410 = vadd.f32 %v1337, %v1409
    %v1411 = vpop.f32.mrf.mxu0
    %1412 = vdwg.mxu0
    %vm1413 = vcmask 400384
    %v1414 = vsel %vm1413, %v1375, 0.0
    %1415 = vadd.xlane.f32.xlu0 %v1414
    %v1416 = vpop.xlane.xlu0 %1415
    %v1417 = vsel %vm1413, %v1378, 0.0
    %1418 = vadd.xlane.f32.xlu0 %v1417
    %v1419 = vpop.xlane.xlu0 %1418
    %v1420 = vsel %vm1413, %v1383, 0.0
    %1421 = vadd.xlane.f32.xlu0 %v1420
    %v1422 = vpop.xlane.xlu0 %1421
    %v1423 = vsel %vm1413, %v1386, 0.0
    %1424 = vadd.xlane.f32.xlu0 %v1423
    %v1425 = vpop.xlane.xlu0 %1424
    %v1426 = vsel %vm1413, %v1391, 0.0
    %1427 = vadd.xlane.f32.xlu0 %v1426
    %v1428 = vpop.xlane.xlu0 %1427
    %v1429 = vsel %vm1413, %v1394, 0.0
    %1430 = vadd.xlane.f32.xlu0 %v1429
    %v1431 = vpop.xlane.xlu0 %1430
    %v1432 = vsel %vm1413, %v1399, 0.0
    %1433 = vadd.xlane.f32.xlu0 %v1432
    %v1434 = vpop.xlane.xlu0 %1433
    %v1435 = vsel %vm1413, %v1402, 0.0
    %1436 = vadd.xlane.f32.xlu0 %v1435
    %v1437 = vpop.xlane.xlu0 %1436
    %v1438 = vsel %vm1413, %v1407, 0.0
    %1439 = vadd.xlane.f32.xlu0 %v1438
    %v1440 = vpop.xlane.xlu0 %1439
    %vm1441 = vcmask 396288
    %v1442 = vsel %vm1441, %v1410, 0.0
    %1443 = vadd.xlane.f32.xlu0 %v1442
    %v1444 = vpop.xlane.xlu0 %1443
    %v1445 = vmul.f32 %v1416, 0.020408163
    %v1446 = vmul.f32 %v1419, 0.020408163
    %v1447 = vmul.f32 %v1422, 0.020408163
    %v1448 = vmul.f32 %v1425, 0.020408163
    %v1449 = vmul.f32 %v1428, 0.020408163
    %v1450 = vmul.f32 %v1431, 0.020408163
    %v1451 = vmul.f32 %v1434, 0.020408163
    %v1452 = vmul.f32 %v1437, 0.020408163
    %v1453 = vmul.f32 %v1440, 0.020408163
    %v1454 = vmul.f32 %v1444, 0.020408163
    %v1455 = vld [vmem:[%s2] sm:$0x1]
    %v1457 = vlaneseq
    %v1458 = vshrl.u32 %v1457, 7
    %v1459 = vsub.s32 0, %v1458
    %v1460 = vrot.slane %v1455, %v1459
    %1462 = vbcast.lane.b32.xlu0 %v1460, 256
    %v1463 = vpop.permute.xlu0 %1462
    %s1465 = sor.u32 256, 8
    %1466 = vbcast.lane.b32.xlu0 %v1460, %s1465
    %v1467 = vpop.permute.xlu0 %1466
    %s1469 = sor.u32 256, 16
    %1470 = vbcast.lane.b32.xlu0 %v1460, %s1469
    %v1471 = vpop.permute.xlu0 %1470
    %s1473 = sor.u32 256, 24
    %1474 = vbcast.lane.b32.xlu0 %v1460, %s1473
    %v1475 = vpop.permute.xlu0 %1474
    %s1477 = sor.u32 256, 32
    %1478 = vbcast.lane.b32.xlu0 %v1460, %s1477
    %v1479 = vpop.permute.xlu0 %1478
    %s1481 = sor.u32 256, 40
    %1482 = vbcast.lane.b32.xlu0 %v1460, %s1481
    %v1483 = vpop.permute.xlu0 %1482
    %s1485 = sor.u32 256, 48
    %1486 = vbcast.lane.b32.xlu0 %v1460, %s1485
    %v1487 = vpop.permute.xlu0 %1486
    %s1489 = sor.u32 256, 56
    %1490 = vbcast.lane.b32.xlu0 %v1460, %s1489
    %v1491 = vpop.permute.xlu0 %1490
    %s1493 = sor.u32 256, 64
    %1494 = vbcast.lane.b32.xlu0 %v1460, %s1493
    %v1495 = vpop.permute.xlu0 %1494
    %s1497 = sor.u32 256, 72
    %1498 = vbcast.lane.b32.xlu0 %v1460, %s1497
    %v1499 = vpop.permute.xlu0 %1498
    %v1510 = vadd.f32 %v1445, %v1463
    %v1511 = vadd.f32 %v1446, %v1467
    %v1512 = vadd.f32 %v1447, %v1471
    %v1513 = vadd.f32 %v1448, %v1475
    %v1514 = vadd.f32 %v1449, %v1479
    %v1515 = vadd.f32 %v1450, %v1483
    %v1516 = vadd.f32 %v1451, %v1487
    %v1517 = vadd.f32 %v1452, %v1491
    %v1518 = vadd.f32 %v1453, %v1495
    %v1519 = vadd.f32 %v1454, %v1499
    %1530 = vset.pattern.permute.xlu0 0
    %1531 = vperm.xlu0 %1530, %v1510
    %v1532 = vpop.permute.xlu0 %1531
    %1533 = vset.pattern.permute.xlu0 0
    %1534 = vperm.xlu0 %1533, %v1511
    %v1535 = vpop.permute.xlu0 %1534
    %1536 = vset.pattern.permute.xlu0 0
    %1537 = vperm.xlu0 %1536, %v1512
    %v1538 = vpop.permute.xlu0 %1537
    %1539 = vset.pattern.permute.xlu0 0
    %1540 = vperm.xlu0 %1539, %v1513
    %v1541 = vpop.permute.xlu0 %1540
    %1542 = vset.pattern.permute.xlu0 0
    %1543 = vperm.xlu0 %1542, %v1514
    %v1544 = vpop.permute.xlu0 %1543
    %1545 = vset.pattern.permute.xlu0 0
    %1546 = vperm.xlu0 %1545, %v1515
    %v1547 = vpop.permute.xlu0 %1546
    %1548 = vset.pattern.permute.xlu0 0
    %1549 = vperm.xlu0 %1548, %v1516
    %v1550 = vpop.permute.xlu0 %1549
    %1551 = vset.pattern.permute.xlu0 0
    %1552 = vperm.xlu0 %1551, %v1517
    %v1553 = vpop.permute.xlu0 %1552
    %1554 = vset.pattern.permute.xlu0 0
    %1555 = vperm.xlu0 %1554, %v1518
    %v1556 = vpop.permute.xlu0 %1555
    %1557 = vset.pattern.permute.xlu0 0
    %1558 = vperm.xlu0 %1557, %v1519
    %v1559 = vpop.permute.xlu0 %1558
    %v1560 = vlaneseq
    %v1561 = vand.u32 %v1560, 127
    %v1562 = vlaneseq
    %v1563 = vshrl.u32 %v1562, 7
    %v1564 = vsub.s32 %v1561, %v1563
    %v1565 = vrot.slane %v1532, %v1564
    %v1566 = vadd.s32 %v1561, 4294967288
    %v1567 = vlaneseq
    %v1568 = vshrl.u32 %v1567, 7
    %v1569 = vsub.s32 %v1566, %v1568
    %v1570 = vrot.slane %v1535, %v1569
    %vm1571 = vcmask 130112
    %v1572 = vsel %vm1571, %v1570, %v1565
    %v1573 = vadd.s32 %v1561, 4294967280
    %v1574 = vlaneseq
    %v1575 = vshrl.u32 %v1574, 7
    %v1576 = vsub.s32 %v1573, %v1575
    %v1577 = vrot.slane %v1538, %v1576
    %vm1578 = vcmask 195712
    %v1579 = vsel %vm1578, %v1577, %v1572
    %v1580 = vadd.s32 %v1561, 4294967272
    %v1581 = vlaneseq
    %v1582 = vshrl.u32 %v1581, 7
    %v1583 = vsub.s32 %v1580, %v1582
    %v1584 = vrot.slane %v1541, %v1583
    %vm1585 = vcmask 261312
    %v1586 = vsel %vm1585, %v1584, %v1579
    %v1587 = vadd.s32 %v1561, 4294967264
    %v1588 = vlaneseq
    %v1589 = vshrl.u32 %v1588, 7
    %v1590 = vsub.s32 %v1587, %v1589
    %v1591 = vrot.slane %v1544, %v1590
    %vm1592 = vcmask 326912
    %v1593 = vsel %vm1592, %v1591, %v1586
    %v1594 = vadd.s32 %v1561, 4294967256
    %v1595 = vlaneseq
    %v1596 = vshrl.u32 %v1595, 7
    %v1597 = vsub.s32 %v1594, %v1596
    %v1598 = vrot.slane %v1547, %v1597
    %vm1599 = vcmask 392512
    %v1600 = vsel %vm1599, %v1598, %v1593
    %v1601 = vadd.s32 %v1561, 4294967248
    %v1602 = vlaneseq
    %v1603 = vshrl.u32 %v1602, 7
    %v1604 = vsub.s32 %v1601, %v1603
    %v1605 = vrot.slane %v1550, %v1604
    %vm1606 = vcmask 458112
    %v1607 = vsel %vm1606, %v1605, %v1600
    %v1608 = vadd.s32 %v1561, 4294967240
    %v1609 = vlaneseq
    %v1610 = vshrl.u32 %v1609, 7
    %v1611 = vsub.s32 %v1608, %v1610
    %v1612 = vrot.slane %v1553, %v1611
    %vm1613 = vcmask 523712
    %v1614 = vsel %vm1613, %v1612, %v1607
    %v1615 = vadd.s32 %v1561, 4294967232
    %v1616 = vlaneseq
    %v1617 = vshrl.u32 %v1616, 7
    %v1618 = vsub.s32 %v1615, %v1617
    %v1619 = vrot.slane %v1556, %v1618
    %vm1620 = vcmask 589312
    %v1621 = vsel %vm1620, %v1619, %v1614
    %v1622 = vadd.s32 %v1561, 4294967224
    %v1623 = vlaneseq
    %v1624 = vshrl.u32 %v1623, 7
    %v1625 = vsub.s32 %v1622, %v1624
    %v1626 = vrot.slane %v1559, %v1625
    %vm1627 = vcmask 654912
    %v1628 = vsel %vm1627, %v1626, %v1621
    %vm1630 = vcmask 614400
    %1631 = vst.msk [vmem:[#allocation2] sm:$0x1] %vm1630, %v1628
    // Predicated region
    $region14: #{tpu_custom_call.1} parent=1 // pred_check
      _
    $region15: #{tpu_custom_call.1} parent=1 // pred_check_branch
      %1633 = sbr.rel (0) target = $region17
    $region16: #{tpu_custom_call.1} parent=1 // pred_region
      %s1635 = ssub.s32 16, 16
      %1636 = vsyncadd [#allocation3], %s1635
      %s1638 = sshll.u32 [#allocation2], 4
      %s1639 = int_to_ptr.vmem [resolvable:$true] %s1638
      %1641 = dma.vmem_to_hbm [thread:$0]  %s1639, 16, %s3, [#allocation3]
    $region17: #{tpu_custom_call.1} parent=1 // pred_fallthru
      _
    // Predicated region
    $region18: #{tpu_custom_call.1} parent=1 // pred_check
      _
    $region19: #{tpu_custom_call.1} parent=1 // pred_check_branch
      %1643 = sbr.rel (0) target = $region21
    $region20: #{tpu_custom_call.1} parent=1 // pred_region
      %1644 = dma.done [#allocation3], 16
    $region21: #{tpu_custom_call.1} parent=1 // pred_fallthru
      _
    %1645 = vsyncpa [#allocation3], 1

</llo_original>
